<compile_context>
chip_gen: v5e
topology: v5e:2x2
jax: 0.10.0
libtpu: 0.0.40
codegen_flags: <defaults>
</compile_context>

<pallas_src>
import numpy as np
import jax
import jax.numpy as jnp
from jax.experimental import pallas as pl
from jax.experimental.pallas import tpu as pltpu

F32 = jnp.float32

# ---------------- small synthetic config ----------------
OBS_LEN = 8            # obs_len
PRED_LEN = 8           # pred_len
H_DIM = 32             # encoder / decoder / mhsa hidden dim
CONV_FILTERS = 8       # encoder conv filters
EMB_DIM = 16           # decoder spatial embedding dim
NUM_HEADS = 4          # mhsa heads
MLP_DIM = 64           # mlp_decoder_context hidden dim
N_TOTAL = 6            # total objects across the batch
START_END = [(0, 3), (3, 6)]   # start_end_seq, batch of 2 scenes
LN_EPS = 1e-5
NEG_INF = -1e9


def _round8(n):
    return ((n + 7) // 8) * 8


# ------------- packed weight-slab layout (static, module level) --------------
# One (W_SLAB_ROWS, 128) f32 slab; each matrix at an 8-aligned row offset,
# lanes [0:cols], zero-padded elsewhere.  Sliced in-kernel at static offsets.
_W_SPECS = (
    ('enc_win',  2 * 3,              4 * H_DIM),      # fused conv+W_ih  (6,128)
    ('enc_whh',  H_DIM,              4 * H_DIM),      # (32,128)
    ('wqkv',     H_DIM,              3 * H_DIM),      # fused Q|K|V      (32,96)
    ('wo',       H_DIM,              H_DIM),          # (32,32)
    ('mlp_w1',   2 * H_DIM,          MLP_DIM),        # (64,64)
    ('mlp_w2',   MLP_DIM,            H_DIM),          # (64,32)
    ('dec_wx0',  2,                  4 * H_DIM),      # (2,128)
    ('dec_whh',  H_DIM,              4 * H_DIM),      # (32,128)
    ('dec_whf',  H_DIM,              4 * H_DIM),      # (32,128)
    ('wpos_blk', PRED_LEN * H_DIM,   PRED_LEN * 2),   # block-diag Wpos (256,16)
)
W_SLAB_COLS = 4 * H_DIM
_W_OFFSETS = {}
_row = 0
for _n, _r, _c in _W_SPECS:
    _W_OFFSETS[_n] = (_row, _r, _c)
    _row += _round8(_r)
W_SLAB_ROWS = _row

# One (16,128) bias slab; one bias per row, lanes [0:width].
_B_SPECS = (
    ('enc_bin', 4 * H_DIM), ('lne_g', H_DIM), ('lne_b', H_DIM),
    ('lnd_g', 2 * H_DIM), ('lnd_b', 2 * H_DIM),
    ('mlp_b1', MLP_DIM), ('mlp_b2', H_DIM),
    ('dec_bx', 4 * H_DIM), ('dec_bf', 4 * H_DIM),
    ('bpos_tiled', PRED_LEN * 2),
)
_B_OFFSETS = {name: (i, w) for i, (name, w) in enumerate(_B_SPECS)}
B_SLAB_ROWS = _round8(len(_B_SPECS))
B_SLAB_COLS = 4 * H_DIM


# =====================  in-kernel helpers (pure jnp, traced inside)  ==========

def _w(ref, name):
    off, r, c = _W_OFFSETS[name]
    return ref[off:off + r, 0:c]


def _b(ref, name):
    row, w = _B_OFFSETS[name]
    return ref[row:row + 1, 0:w]          # (1, w) -> broadcasts over objects


def _layernorm(x, g, b):
    mu = jnp.mean(x, axis=-1, keepdims=True)
    var = jnp.mean((x - mu) ** 2, axis=-1, keepdims=True)
    return (x - mu) * jax.lax.rsqrt(var + LN_EPS) * g + b


def _lstm_step(gates, c):
    """Gate columns pre-ordered [i, f, o, g]; gates (n,4H), c (n,H)."""
    H = c.shape[-1]
    sig = jax.nn.sigmoid(gates[:, 0:3 * H])            # one EUP pass for i,f,o
    g_g = jnp.tanh(gates[:, 3 * H:4 * H])
    i_g = sig[:, 0:H]
    f_g = sig[:, H:2 * H]
    o_g = sig[:, 2 * H:3 * H]
    c_new = f_g * c + i_g * g_g
    h_new = o_g * jnp.tanh(c_new)
    return h_new, c_new


# =====================  the single fused Pallas kernel  =======================

def fused_forward_kernel(unfold_ref, sid_col_ref, sid_row_ref, w_ref, b_ref,
                         out_ref, hcat_ref):
    """Whole TrajectoryGenerator forward for all scenes.

    unfold:  (OBS_LEN*N, 6) im2col'd relative trajectories (3 taps x 2 ch)
    sid_col: (N, 1) / sid_row: (1, N)  scene ids (block-diag attention mask)
    w_ref:   (W_SLAB_ROWS, 128) packed matrices;  b_ref: (B_SLAB_ROWS, 128)
    out:     (N, PRED_LEN*2)
    hcat:    VMEM scratch (N, PRED_LEN*H) — stacked decoder hidden states
    """
    N = sid_col_ref.shape[0]
    H = H_DIM
    dh = H // NUM_HEADS

    # ---------- Encoder: Conv1d + LSTM input projection fused -> ONE matmul ----
    x_gates = (jnp.dot(unfold_ref[...], _w(w_ref, 'enc_win'),
                       preferred_element_type=F32)
               + _b(b_ref, 'enc_bin'))                           # (T*N, 4H)
    enc_whh = _w(w_ref, 'enc_whh')
    h = jnp.zeros((N, H), F32)
    c = jnp.zeros((N, H), F32)
    for t in range(OBS_LEN):                                     # serial recurrence
        gates = (x_gates[t * N:(t + 1) * N, :]
                 + jnp.dot(h, enc_whh, preferred_element_type=F32))
        h, c = _lstm_step(gates, c)

    enc_h = _layernorm(h, _b(b_ref, 'lne_g'), _b(b_ref, 'lne_b'))  # lne

    # ---------- MHSA over ALL objects, block-diagonal scene mask ---------------
    qkv = jnp.dot(enc_h, _w(w_ref, 'wqkv'), preferred_element_type=F32)  # (N,3H)
    mask = jnp.where(sid_col_ref[...] == sid_row_ref[...],
                     0.0, NEG_INF).astype(F32)                   # (N, N), O(N) input
    scale = 1.0 / (dh ** 0.5)
    heads = []
    for head in range(NUM_HEADS):                                # independent MXU ops
        lo = head * dh
        qh = qkv[:, lo:lo + dh]
        kh = qkv[:, H + lo:H + lo + dh]
        vh = qkv[:, 2 * H + lo:2 * H + lo + dh]
        s = jax.lax.dot_general(qh, kh, (((1,), (1,)), ((), ())),
                                preferred_element_type=F32) * scale + mask
        s = s - jnp.max(s, axis=-1, keepdims=True)
        e = jnp.exp(s)
        attn = e / jnp.sum(e, axis=-1, keepdims=True)            # exact (off crit path)
        heads.append(jnp.dot(attn, vh, preferred_element_type=F32))
    attn_out = jnp.dot(jnp.concatenate(heads, axis=1), _w(w_ref, 'wo'),
                       preferred_element_type=F32)               # single Wo matmul

    # ---------- lnd + mlp_decoder_context --------------------------------------
    ctx = jnp.concatenate([enc_h, attn_out], axis=1)             # (N, 2H)
    ctxn = _layernorm(ctx, _b(b_ref, 'lnd_g'), _b(b_ref, 'lnd_b'))
    h1 = jnp.tanh(jnp.dot(ctxn, _w(w_ref, 'mlp_w1'), preferred_element_type=F32)
                  + _b(b_ref, 'mlp_b1'))
    dec_h = jnp.tanh(jnp.dot(h1, _w(w_ref, 'mlp_w2'), preferred_element_type=F32)
                     + _b(b_ref, 'mlp_b2'))

    # ---------- TemporalDecoder: per-step linear chain collapsed to ONE matmul -
    # last_pos_rel = obs_traj_rel[-1] lives inside the im2col slab (tap 1).
    last_rel = unfold_ref[(OBS_LEN - 1) * N:OBS_LEN * N, 2:4]    # (N, 2)
    g0 = (jnp.dot(last_rel, _w(w_ref, 'dec_wx0'), preferred_element_type=F32)
          + _b(b_ref, 'dec_bx'))
    dec_whh = _w(w_ref, 'dec_whh')
    dec_whf = _w(w_ref, 'dec_whf')
    dec_bf = _b(b_ref, 'dec_bf')
    h = dec_h
    c = jnp.zeros((N, H), F32)
    for t in range(PRED_LEN):
        if t == 0:
            gates = g0 + jnp.dot(h, dec_whh, preferred_element_type=F32)
        else:
            # rel feedback folded into dec_whf -> ONE matmul per serial step
            gates = jnp.dot(h, dec_whf, preferred_element_type=F32) + dec_bf
        h, c = _lstm_step(gates, c)
        hcat_ref[:, t * H:(t + 1) * H] = h                       # static lane offset

    # All PRED_LEN hidden2pos projections as ONE block-diag matmul -> out slab.
    out_ref[...] = (jnp.dot(hcat_ref[...], _w(w_ref, 'wpos_blk'),
                            preferred_element_type=F32)
                    + _b(b_ref, 'bpos_tiled'))


# =====================  parameters (torch-style layout)  ======================

def init_params(key):
    ks = jax.random.split(key, 20)

    def rn(k, shape, scale=0.1):
        return (scale * jax.random.normal(k, shape)).astype(F32)

    p = {}
    # Encoder: Conv1d(2, C, 3, padding=1) stored (2, 3, C); LSTM(C, H)
    p['conv_w'] = rn(ks[0], (2, 3, CONV_FILTERS))
    p['conv_b'] = rn(ks[1], (CONV_FILTERS,))
    p['enc_wih'] = rn(ks[2], (CONV_FILTERS, 4 * H_DIM))   # W_ih^T
    p['enc_whh'] = rn(ks[3], (H_DIM, 4 * H_DIM))          # W_hh^T
    p['enc_b'] = rn(ks[4], (4 * H_DIM,))                  # b_ih + b_hh
    p['lne_g'] = jnp.ones((H_DIM,), F32)
    p['lne_b'] = jnp.zeros((H_DIM,), F32)
    # MHSA (bias=False): W^T stored
    p['wq'] = rn(ks[5], (H_DIM, H_DIM))
    p['wk'] = rn(ks[6], (H_DIM, H_DIM))
    p['wv'] = rn(ks[7], (H_DIM, H_DIM))
    p['wo'] = rn(ks[8], (H_DIM, H_DIM))
    # lnd (LayerNorm(2H))
    p['lnd_g'] = jnp.ones((2 * H_DIM,), F32)
    p['lnd_b'] = jnp.zeros((2 * H_DIM,), F32)
    # mlp_decoder_context: [2H, MLP_DIM, H], Linear+Tanh each
    p['mlp_w1'] = rn(ks[9], (2 * H_DIM, MLP_DIM))
    p['mlp_b1'] = rn(ks[10], (MLP_DIM,))
    p['mlp_w2'] = rn(ks[11], (MLP_DIM, H_DIM))
    p['mlp_b2'] = rn(ks[12], (H_DIM,))
    # TemporalDecoder
    p['dec_wemb'] = rn(ks[13], (2, EMB_DIM))
    p['dec_bemb'] = rn(ks[14], (EMB_DIM,))
    p['dec_wih'] = rn(ks[15], (EMB_DIM, 4 * H_DIM))
    p['dec_whh'] = rn(ks[16], (H_DIM, 4 * H_DIM))
    p['dec_b'] = rn(ks[17], (4 * H_DIM,))
    p['dec_wpos'] = rn(ks[18], (H_DIM, 2))
    p['dec_bpos'] = rn(ks[19], (2,))
    return p


def _gate_reorder(w):
    """torch gate order [i,f,g,o] -> kernel order [i,f,o,g] along last (4H) axis."""
    H = H_DIM
    return jnp.concatenate([w[..., 0:2 * H], w[..., 3 * H:4 * H],
                            w[..., 2 * H:3 * H]], axis=-1)


def prepare_packed_params(p):
    """Host-side (call ONCE, outside the jitted hot path):
    exact algebraic weight fusion + gate reorder + packing into two slabs."""
    # Conv1d weight -> im2col layout [tap*2 + ci, c], then fold LSTM W_ih.
    conv_flat = jnp.transpose(p['conv_w'], (1, 0, 2)).reshape(2 * 3, CONV_FILTERS)
    emb_ih = jnp.dot(p['dec_wemb'], p['dec_wih'])                  # (2, 4H)
    bx = jnp.dot(p['dec_bemb'], p['dec_wih']) + p['dec_b']         # (4H,)
    # rel feedback folded into recurrence: W_hh + W_pos @ W_emb @ W_ih
    dec_whf = jnp.dot(jnp.dot(p['dec_wpos'], p['dec_wemb']), p['dec_wih']) + p['dec_whh']
    dec_bf = jnp.dot(jnp.dot(p['dec_bpos'], p['dec_wemb']), p['dec_wih']) + bx
    # Block-diagonal hidden2pos: (PRED_LEN*H, PRED_LEN*2)
    wpos_blk = jnp.zeros((PRED_LEN * H_DIM, PRED_LEN * 2), F32)
    for t in range(PRED_LEN):
        wpos_blk = wpos_blk.at[t * H_DIM:(t + 1) * H_DIM, 2 * t:2 * t + 2].set(p['dec_wpos'])
    bpos_tiled = jnp.tile(p['dec_bpos'], PRED_LEN)                 # (PRED_LEN*2,)

    mats = {
        'enc_win': _gate_reorder(jnp.dot(conv_flat, p['enc_wih'])),
        'enc_whh': _gate_reorder(p['enc_whh']),
        'wqkv': jnp.concatenate([p['wq'], p['wk'], p['wv']], axis=1),
        'wo': p['wo'],
        'mlp_w1': p['mlp_w1'], 'mlp_w2': p['mlp_w2'],
        'dec_wx0': _gate_reorder(emb_ih),
        'dec_whh': _gate_reorder(p['dec_whh']),
        'dec_whf': _gate_reorder(dec_whf),
        'wpos_blk': wpos_blk,
    }
    biases = {
        'enc_bin': _gate_reorder(jnp.dot(p['conv_b'], p['enc_wih']) + p['enc_b']),
        'lne_g': p['lne_g'], 'lne_b': p['lne_b'],
        'lnd_g': p['lnd_g'], 'lnd_b': p['lnd_b'],
        'mlp_b1': p['mlp_b1'], 'mlp_b2': p['mlp_b2'],
        'dec_bx': _gate_reorder(bx),
        'dec_bf': _gate_reorder(dec_bf),
        'bpos_tiled': bpos_tiled,
    }

    # ---- pack matrix slab (row-offsets 8-aligned, lanes zero-padded to 128) ----
    blocks = []
    for name, r, c in _W_SPECS:
        w = mats[name].astype(F32)
        assert w.shape == (r, c), (name, w.shape)
        blocks.append(jnp.pad(w, ((0, _round8(r) - r), (0, W_SLAB_COLS - c))))
    w_slab = jnp.concatenate(blocks, axis=0)
    assert w_slab.shape == (W_SLAB_ROWS, W_SLAB_COLS)

    # ---- pack bias slab (one bias per row) ----
    rows = []
    for name, width in _B_SPECS:
        v = biases[name].astype(F32).reshape(1, -1)
        assert v.shape[1] == width, (name, v.shape)
        rows.append(jnp.pad(v, ((0, 0), (0, B_SLAB_COLS - width))))
    b_slab = jnp.concatenate(rows, axis=0)
    b_slab = jnp.pad(b_slab, ((0, B_SLAB_ROWS - b_slab.shape[0]), (0, 0)))
    return w_slab, b_slab


# =====================  forward (single pallas_call)  =========================

def trajectory_generator_forward(w_slab, b_slab, obs_traj, obs_traj_rel,
                                 start_end_seq, agent_idx=None):
    """Mirrors TrajectoryGenerator.forward for the configuration described above."""
    assert agent_idx is None  # TODO(synk): agent_idx gather branch not implemented
    del obs_traj              # encoder_use_rel_disp=True -> relative displacements
    T, n_total, _ = obs_traj_rel.shape

    # im2col for Conv1d(k=3, pad=1): unfold[t] = [x[t-1], x[t], x[t+1]] per coord.
    xpad = jnp.pad(obs_traj_rel, ((1, 1), (0, 0), (0, 0)))         # (T+2, N, 2)
    unfold = jnp.concatenate([xpad[k:k + T] for k in range(3)], axis=-1)  # (T, N, 6)
    unfold2d = unfold.reshape(T * n_total, 2 * 3)

    # O(N) scene ids (trace-time constants) instead of a dense (N,N) mask.
    scene_id = np.zeros((n_total,), np.float32)
    for i, (s, e) in enumerate(start_end_seq):
        scene_id[s:e] = float(i)
    sid_col = jnp.asarray(scene_id.reshape(n_total, 1))
    sid_row = jnp.asarray(scene_id.reshape(1, n_total))

    bytes_accessed = 4 * (w_slab.size + b_slab.size + unfold2d.size
                          + n_total * (2 + PRED_LEN * 2))
    cost = pl.CostEstimate(flops=1_200_000, transcendentals=20_000,
                           bytes_accessed=int(bytes_accessed))

    out_flat = pl.pallas_call(
        fused_forward_kernel,
        out_shape=jax.ShapeDtypeStruct((n_total, PRED_LEN * 2), F32),
        in_specs=[pl.BlockSpec(memory_space=pltpu.MemorySpace.VMEM)] * 5,
        out_specs=pl.BlockSpec(memory_space=pltpu.MemorySpace.VMEM),
        scratch_shapes=[pltpu.VMEM((n_total, PRED_LEN * H_DIM), F32)],
        compiler_params=pltpu.CompilerParams(vmem_limit_bytes=16 * 1024 * 1024),
        cost_estimate=cost,
    )(unfold2d, sid_col, sid_row, w_slab, b_slab)

    # (N, PRED_LEN*2) kernel output -> (PRED_LEN, N, 2) torch layout.
    return out_flat.reshape(n_total, PRED_LEN, 2).transpose(1, 0, 2)


if __name__ == "__main__":
    key = jax.random.PRNGKey(0)
    kp, k1, k2 = jax.random.split(key, 3)
    params = init_params(kp)
    # Hoisted out of the per-call path: fuse + pack weights exactly once.
    w_slab, b_slab = prepare_packed_params(params)
    w_slab = jax.device_put(w_slab)
    b_slab = jax.device_put(b_slab)

    obs_traj = jax.random.normal(k1, (OBS_LEN, N_TOTAL, 2), dtype=F32)
    obs_traj_rel = jax.random.normal(k2, (OBS_LEN, N_TOTAL, 2), dtype=F32)

    fwd = jax.jit(lambda w, b, a, r: trajectory_generator_forward(w, b, a, r, START_END))
    pred = jax.block_until_ready(fwd(w_slab, b_slab, obs_traj, obs_traj_rel))

    assert pred.shape == (PRED_LEN, N_TOTAL, 2) and pred.dtype == jnp.float32
    assert bool(jnp.all(jnp.isfinite(pred)))
    print("KERNEL_OK")
</pallas_src>

<mosaic_0001>
module attributes {stable_mosaic.version = 11 : i64} {
  func.func @fused_forward_kernel(%arg0: memref<48x6xf32, #tpu.memory_space<vmem>>, %arg1: memref<6x1xf32, #tpu.memory_space<vmem>>, %arg2: memref<1x6xf32, #tpu.memory_space<vmem>>, %arg3: memref<560x128xf32, #tpu.memory_space<vmem>>, %arg4: memref<16x128xf32, #tpu.memory_space<vmem>>, %arg5: memref<6x16xf32, #tpu.memory_space<vmem>>, %arg6: memref<6x256xf32, #tpu.memory_space<vmem>>) attributes {dimension_semantics = [], scalar_prefetch = 0 : i64, scratch_operands = 1 : i64, tpu.core_type = #tpu.core_type<tc>} {
    %c0 = arith.constant 0 : index
    %c0_0 = arith.constant 0 : index
    %0 = vector.load %arg0[%c0, %c0_0] : memref<48x6xf32, #tpu.memory_space<vmem>>, vector<48x6xf32>
    %c0_1 = arith.constant 0 : index
    %c0_2 = arith.constant 0 : index
    %1 = vector.load %arg3[%c0_1, %c0_2] : memref<560x128xf32, #tpu.memory_space<vmem>>, vector<6x128xf32>
    %cst = arith.constant dense<0.000000e+00> : vector<48x128xf32>
    %2 = tpu.matmul %0, %1, %cst {dimension_numbers = #tpu.dot_dimension_numbers<[1], [0], [0], [1], [0, 0, 1, 1], [], []>} : vector<48x6xf32>, vector<6x128xf32>, vector<48x128xf32> -> vector<48x128xf32>
    %c0_3 = arith.constant 0 : index
    %c0_4 = arith.constant 0 : index
    %3 = vector.load %arg4[%c0_3, %c0_4] : memref<16x128xf32, #tpu.memory_space<vmem>>, vector<1x128xf32>
    %4 = vector.broadcast %3 : vector<1x128xf32> to vector<48x128xf32>
    %5 = arith.addf %2, %4 : vector<48x128xf32>
    %c8 = arith.constant 8 : index
    %c0_5 = arith.constant 0 : index
    %6 = vector.load %arg3[%c8, %c0_5] : memref<560x128xf32, #tpu.memory_space<vmem>>, vector<32x128xf32>
    %cst_6 = arith.constant 0.000000e+00 : f32
    %7 = vector.broadcast %cst_6 : f32 to vector<6x32xf32>
    %cst_7 = arith.constant 0.000000e+00 : f32
    %8 = vector.broadcast %cst_7 : f32 to vector<6x32xf32>
    %9 = vector.extract_strided_slice %5 {offsets = [0, 0], sizes = [6, 128], strides = [1, 1]} : vector<48x128xf32> to vector<6x128xf32>
    %cst_8 = arith.constant dense<0.000000e+00> : vector<6x128xf32>
    %10 = tpu.matmul %7, %6, %cst_8 {dimension_numbers = #tpu.dot_dimension_numbers<[1], [0], [0], [1], [0, 0, 1, 1], [], []>} : vector<6x32xf32>, vector<32x128xf32>, vector<6x128xf32> -> vector<6x128xf32>
    %11 = arith.addf %9, %10 : vector<6x128xf32>
    %12 = vector.extract_strided_slice %11 {offsets = [0, 0], sizes = [6, 96], strides = [1, 1]} : vector<6x128xf32> to vector<6x96xf32>
    %13 = arith.negf %12 : vector<6x96xf32>
    %14 = math.exp %13 : vector<6x96xf32>
    %cst_9 = arith.constant 1.000000e+00 : f32
    %15 = vector.broadcast %cst_9 : f32 to vector<6x96xf32>
    %16 = arith.addf %15, %14 : vector<6x96xf32>
    %17 = arith.divf %15, %16 : vector<6x96xf32>
    %18 = vector.extract_strided_slice %11 {offsets = [0, 96], sizes = [6, 32], strides = [1, 1]} : vector<6x128xf32> to vector<6x32xf32>
    %19 = math.tanh %18 : vector<6x32xf32>
    %20 = vector.extract_strided_slice %17 {offsets = [0, 0], sizes = [6, 32], strides = [1, 1]} : vector<6x96xf32> to vector<6x32xf32>
    %21 = vector.extract_strided_slice %17 {offsets = [0, 32], sizes = [6, 32], strides = [1, 1]} : vector<6x96xf32> to vector<6x32xf32>
    %22 = vector.extract_strided_slice %17 {offsets = [0, 64], sizes = [6, 32], strides = [1, 1]} : vector<6x96xf32> to vector<6x32xf32>
    %23 = arith.mulf %21, %8 : vector<6x32xf32>
    %24 = arith.mulf %20, %19 : vector<6x32xf32>
    %25 = arith.addf %23, %24 : vector<6x32xf32>
    %26 = math.tanh %25 : vector<6x32xf32>
    %27 = arith.mulf %22, %26 : vector<6x32xf32>
    %28 = vector.extract_strided_slice %5 {offsets = [6, 0], sizes = [6, 128], strides = [1, 1]} : vector<48x128xf32> to vector<6x128xf32>
    %cst_10 = arith.constant dense<0.000000e+00> : vector<6x128xf32>
    %29 = tpu.matmul %27, %6, %cst_10 {dimension_numbers = #tpu.dot_dimension_numbers<[1], [0], [0], [1], [0, 0, 1, 1], [], []>} : vector<6x32xf32>, vector<32x128xf32>, vector<6x128xf32> -> vector<6x128xf32>
    %30 = arith.addf %28, %29 : vector<6x128xf32>
    %31 = vector.extract_strided_slice %30 {offsets = [0, 0], sizes = [6, 96], strides = [1, 1]} : vector<6x128xf32> to vector<6x96xf32>
    %32 = arith.negf %31 : vector<6x96xf32>
    %33 = math.exp %32 : vector<6x96xf32>
    %cst_11 = arith.constant 1.000000e+00 : f32
    %34 = vector.broadcast %cst_11 : f32 to vector<6x96xf32>
    %35 = arith.addf %34, %33 : vector<6x96xf32>
    %36 = arith.divf %34, %35 : vector<6x96xf32>
    %37 = vector.extract_strided_slice %30 {offsets = [0, 96], sizes = [6, 32], strides = [1, 1]} : vector<6x128xf32> to vector<6x32xf32>
    %38 = math.tanh %37 : vector<6x32xf32>
    %39 = vector.extract_strided_slice %36 {offsets = [0, 0], sizes = [6, 32], strides = [1, 1]} : vector<6x96xf32> to vector<6x32xf32>
    %40 = vector.extract_strided_slice %36 {offsets = [0, 32], sizes = [6, 32], strides = [1, 1]} : vector<6x96xf32> to vector<6x32xf32>
    %41 = vector.extract_strided_slice %36 {offsets = [0, 64], sizes = [6, 32], strides = [1, 1]} : vector<6x96xf32> to vector<6x32xf32>
    %42 = arith.mulf %40, %25 : vector<6x32xf32>
    %43 = arith.mulf %39, %38 : vector<6x32xf32>
    %44 = arith.addf %42, %43 : vector<6x32xf32>
    %45 = math.tanh %44 : vector<6x32xf32>
    %46 = arith.mulf %41, %45 : vector<6x32xf32>
    %47 = vector.extract_strided_slice %5 {offsets = [12, 0], sizes = [6, 128], strides = [1, 1]} : vector<48x128xf32> to vector<6x128xf32>
    %cst_12 = arith.constant dense<0.000000e+00> : vector<6x128xf32>
    %48 = tpu.matmul %46, %6, %cst_12 {dimension_numbers = #tpu.dot_dimension_numbers<[1], [0], [0], [1], [0, 0, 1, 1], [], []>} : vector<6x32xf32>, vector<32x128xf32>, vector<6x128xf32> -> vector<6x128xf32>
    %49 = arith.addf %47, %48 : vector<6x128xf32>
    %50 = vector.extract_strided_slice %49 {offsets = [0, 0], sizes = [6, 96], strides = [1, 1]} : vector<6x128xf32> to vector<6x96xf32>
    %51 = arith.negf %50 : vector<6x96xf32>
    %52 = math.exp %51 : vector<6x96xf32>
    %cst_13 = arith.constant 1.000000e+00 : f32
    %53 = vector.broadcast %cst_13 : f32 to vector<6x96xf32>
    %54 = arith.addf %53, %52 : vector<6x96xf32>
    %55 = arith.divf %53, %54 : vector<6x96xf32>
    %56 = vector.extract_strided_slice %49 {offsets = [0, 96], sizes = [6, 32], strides = [1, 1]} : vector<6x128xf32> to vector<6x32xf32>
    %57 = math.tanh %56 : vector<6x32xf32>
    %58 = vector.extract_strided_slice %55 {offsets = [0, 0], sizes = [6, 32], strides = [1, 1]} : vector<6x96xf32> to vector<6x32xf32>
    %59 = vector.extract_strided_slice %55 {offsets = [0, 32], sizes = [6, 32], strides = [1, 1]} : vector<6x96xf32> to vector<6x32xf32>
    %60 = vector.extract_strided_slice %55 {offsets = [0, 64], sizes = [6, 32], strides = [1, 1]} : vector<6x96xf32> to vector<6x32xf32>
    %61 = arith.mulf %59, %44 : vector<6x32xf32>
    %62 = arith.mulf %58, %57 : vector<6x32xf32>
    %63 = arith.addf %61, %62 : vector<6x32xf32>
    %64 = math.tanh %63 : vector<6x32xf32>
    %65 = arith.mulf %60, %64 : vector<6x32xf32>
    %66 = vector.extract_strided_slice %5 {offsets = [18, 0], sizes = [6, 128], strides = [1, 1]} : vector<48x128xf32> to vector<6x128xf32>
    %cst_14 = arith.constant dense<0.000000e+00> : vector<6x128xf32>
    %67 = tpu.matmul %65, %6, %cst_14 {dimension_numbers = #tpu.dot_dimension_numbers<[1], [0], [0], [1], [0, 0, 1, 1], [], []>} : vector<6x32xf32>, vector<32x128xf32>, vector<6x128xf32> -> vector<6x128xf32>
    %68 = arith.addf %66, %67 : vector<6x128xf32>
    %69 = vector.extract_strided_slice %68 {offsets = [0, 0], sizes = [6, 96], strides = [1, 1]} : vector<6x128xf32> to vector<6x96xf32>
    %70 = arith.negf %69 : vector<6x96xf32>
    %71 = math.exp %70 : vector<6x96xf32>
    %cst_15 = arith.constant 1.000000e+00 : f32
    %72 = vector.broadcast %cst_15 : f32 to vector<6x96xf32>
    %73 = arith.addf %72, %71 : vector<6x96xf32>
    %74 = arith.divf %72, %73 : vector<6x96xf32>
    %75 = vector.extract_strided_slice %68 {offsets = [0, 96], sizes = [6, 32], strides = [1, 1]} : vector<6x128xf32> to vector<6x32xf32>
    %76 = math.tanh %75 : vector<6x32xf32>
    %77 = vector.extract_strided_slice %74 {offsets = [0, 0], sizes = [6, 32], strides = [1, 1]} : vector<6x96xf32> to vector<6x32xf32>
    %78 = vector.extract_strided_slice %74 {offsets = [0, 32], sizes = [6, 32], strides = [1, 1]} : vector<6x96xf32> to vector<6x32xf32>
    %79 = vector.extract_strided_slice %74 {offsets = [0, 64], sizes = [6, 32], strides = [1, 1]} : vector<6x96xf32> to vector<6x32xf32>
    %80 = arith.mulf %78, %63 : vector<6x32xf32>
    %81 = arith.mulf %77, %76 : vector<6x32xf32>
    %82 = arith.addf %80, %81 : vector<6x32xf32>
    %83 = math.tanh %82 : vector<6x32xf32>
    %84 = arith.mulf %79, %83 : vector<6x32xf32>
    %85 = vector.extract_strided_slice %5 {offsets = [24, 0], sizes = [6, 128], strides = [1, 1]} : vector<48x128xf32> to vector<6x128xf32>
    %cst_16 = arith.constant dense<0.000000e+00> : vector<6x128xf32>
    %86 = tpu.matmul %84, %6, %cst_16 {dimension_numbers = #tpu.dot_dimension_numbers<[1], [0], [0], [1], [0, 0, 1, 1], [], []>} : vector<6x32xf32>, vector<32x128xf32>, vector<6x128xf32> -> vector<6x128xf32>
    %87 = arith.addf %85, %86 : vector<6x128xf32>
    %88 = vector.extract_strided_slice %87 {offsets = [0, 0], sizes = [6, 96], strides = [1, 1]} : vector<6x128xf32> to vector<6x96xf32>
    %89 = arith.negf %88 : vector<6x96xf32>
    %90 = math.exp %89 : vector<6x96xf32>
    %cst_17 = arith.constant 1.000000e+00 : f32
    %91 = vector.broadcast %cst_17 : f32 to vector<6x96xf32>
    %92 = arith.addf %91, %90 : vector<6x96xf32>
    %93 = arith.divf %91, %92 : vector<6x96xf32>
    %94 = vector.extract_strided_slice %87 {offsets = [0, 96], sizes = [6, 32], strides = [1, 1]} : vector<6x128xf32> to vector<6x32xf32>
    %95 = math.tanh %94 : vector<6x32xf32>
    %96 = vector.extract_strided_slice %93 {offsets = [0, 0], sizes = [6, 32], strides = [1, 1]} : vector<6x96xf32> to vector<6x32xf32>
    %97 = vector.extract_strided_slice %93 {offsets = [0, 32], sizes = [6, 32], strides = [1, 1]} : vector<6x96xf32> to vector<6x32xf32>
    %98 = vector.extract_strided_slice %93 {offsets = [0, 64], sizes = [6, 32], strides = [1, 1]} : vector<6x96xf32> to vector<6x32xf32>
    %99 = arith.mulf %97, %82 : vector<6x32xf32>
    %100 = arith.mulf %96, %95 : vector<6x32xf32>
    %101 = arith.addf %99, %100 : vector<6x32xf32>
    %102 = math.tanh %101 : vector<6x32xf32>
    %103 = arith.mulf %98, %102 : vector<6x32xf32>
    %104 = vector.extract_strided_slice %5 {offsets = [30, 0], sizes = [6, 128], strides = [1, 1]} : vector<48x128xf32> to vector<6x128xf32>
    %cst_18 = arith.constant dense<0.000000e+00> : vector<6x128xf32>
    %105 = tpu.matmul %103, %6, %cst_18 {dimension_numbers = #tpu.dot_dimension_numbers<[1], [0], [0], [1], [0, 0, 1, 1], [], []>} : vector<6x32xf32>, vector<32x128xf32>, vector<6x128xf32> -> vector<6x128xf32>
    %106 = arith.addf %104, %105 : vector<6x128xf32>
    %107 = vector.extract_strided_slice %106 {offsets = [0, 0], sizes = [6, 96], strides = [1, 1]} : vector<6x128xf32> to vector<6x96xf32>
    %108 = arith.negf %107 : vector<6x96xf32>
    %109 = math.exp %108 : vector<6x96xf32>
    %cst_19 = arith.constant 1.000000e+00 : f32
    %110 = vector.broadcast %cst_19 : f32 to vector<6x96xf32>
    %111 = arith.addf %110, %109 : vector<6x96xf32>
    %112 = arith.divf %110, %111 : vector<6x96xf32>
    %113 = vector.extract_strided_slice %106 {offsets = [0, 96], sizes = [6, 32], strides = [1, 1]} : vector<6x128xf32> to vector<6x32xf32>
    %114 = math.tanh %113 : vector<6x32xf32>
    %115 = vector.extract_strided_slice %112 {offsets = [0, 0], sizes = [6, 32], strides = [1, 1]} : vector<6x96xf32> to vector<6x32xf32>
    %116 = vector.extract_strided_slice %112 {offsets = [0, 32], sizes = [6, 32], strides = [1, 1]} : vector<6x96xf32> to vector<6x32xf32>
    %117 = vector.extract_strided_slice %112 {offsets = [0, 64], sizes = [6, 32], strides = [1, 1]} : vector<6x96xf32> to vector<6x32xf32>
    %118 = arith.mulf %116, %101 : vector<6x32xf32>
    %119 = arith.mulf %115, %114 : vector<6x32xf32>
    %120 = arith.addf %118, %119 : vector<6x32xf32>
    %121 = math.tanh %120 : vector<6x32xf32>
    %122 = arith.mulf %117, %121 : vector<6x32xf32>
    %123 = vector.extract_strided_slice %5 {offsets = [36, 0], sizes = [6, 128], strides = [1, 1]} : vector<48x128xf32> to vector<6x128xf32>
    %cst_20 = arith.constant dense<0.000000e+00> : vector<6x128xf32>
    %124 = tpu.matmul %122, %6, %cst_20 {dimension_numbers = #tpu.dot_dimension_numbers<[1], [0], [0], [1], [0, 0, 1, 1], [], []>} : vector<6x32xf32>, vector<32x128xf32>, vector<6x128xf32> -> vector<6x128xf32>
    %125 = arith.addf %123, %124 : vector<6x128xf32>
    %126 = vector.extract_strided_slice %125 {offsets = [0, 0], sizes = [6, 96], strides = [1, 1]} : vector<6x128xf32> to vector<6x96xf32>
    %127 = arith.negf %126 : vector<6x96xf32>
    %128 = math.exp %127 : vector<6x96xf32>
    %cst_21 = arith.constant 1.000000e+00 : f32
    %129 = vector.broadcast %cst_21 : f32 to vector<6x96xf32>
    %130 = arith.addf %129, %128 : vector<6x96xf32>
    %131 = arith.divf %129, %130 : vector<6x96xf32>
    %132 = vector.extract_strided_slice %125 {offsets = [0, 96], sizes = [6, 32], strides = [1, 1]} : vector<6x128xf32> to vector<6x32xf32>
    %133 = math.tanh %132 : vector<6x32xf32>
    %134 = vector.extract_strided_slice %131 {offsets = [0, 0], sizes = [6, 32], strides = [1, 1]} : vector<6x96xf32> to vector<6x32xf32>
    %135 = vector.extract_strided_slice %131 {offsets = [0, 32], sizes = [6, 32], strides = [1, 1]} : vector<6x96xf32> to vector<6x32xf32>
    %136 = vector.extract_strided_slice %131 {offsets = [0, 64], sizes = [6, 32], strides = [1, 1]} : vector<6x96xf32> to vector<6x32xf32>
    %137 = arith.mulf %135, %120 : vector<6x32xf32>
    %138 = arith.mulf %134, %133 : vector<6x32xf32>
    %139 = arith.addf %137, %138 : vector<6x32xf32>
    %140 = math.tanh %139 : vector<6x32xf32>
    %141 = arith.mulf %136, %140 : vector<6x32xf32>
    %142 = vector.extract_strided_slice %5 {offsets = [42, 0], sizes = [6, 128], strides = [1, 1]} : vector<48x128xf32> to vector<6x128xf32>
    %cst_22 = arith.constant dense<0.000000e+00> : vector<6x128xf32>
    %143 = tpu.matmul %141, %6, %cst_22 {dimension_numbers = #tpu.dot_dimension_numbers<[1], [0], [0], [1], [0, 0, 1, 1], [], []>} : vector<6x32xf32>, vector<32x128xf32>, vector<6x128xf32> -> vector<6x128xf32>
    %144 = arith.addf %142, %143 : vector<6x128xf32>
    %145 = vector.extract_strided_slice %144 {offsets = [0, 0], sizes = [6, 96], strides = [1, 1]} : vector<6x128xf32> to vector<6x96xf32>
    %146 = arith.negf %145 : vector<6x96xf32>
    %147 = math.exp %146 : vector<6x96xf32>
    %cst_23 = arith.constant 1.000000e+00 : f32
    %148 = vector.broadcast %cst_23 : f32 to vector<6x96xf32>
    %149 = arith.addf %148, %147 : vector<6x96xf32>
    %150 = arith.divf %148, %149 : vector<6x96xf32>
    %151 = vector.extract_strided_slice %144 {offsets = [0, 96], sizes = [6, 32], strides = [1, 1]} : vector<6x128xf32> to vector<6x32xf32>
    %152 = math.tanh %151 : vector<6x32xf32>
    %153 = vector.extract_strided_slice %150 {offsets = [0, 0], sizes = [6, 32], strides = [1, 1]} : vector<6x96xf32> to vector<6x32xf32>
    %154 = vector.extract_strided_slice %150 {offsets = [0, 32], sizes = [6, 32], strides = [1, 1]} : vector<6x96xf32> to vector<6x32xf32>
    %155 = vector.extract_strided_slice %150 {offsets = [0, 64], sizes = [6, 32], strides = [1, 1]} : vector<6x96xf32> to vector<6x32xf32>
    %156 = arith.mulf %154, %139 : vector<6x32xf32>
    %157 = arith.mulf %153, %152 : vector<6x32xf32>
    %158 = arith.addf %156, %157 : vector<6x32xf32>
    %159 = math.tanh %158 : vector<6x32xf32>
    %160 = arith.mulf %155, %159 : vector<6x32xf32>
    %c1 = arith.constant 1 : index
    %c0_24 = arith.constant 0 : index
    %161 = vector.load %arg4[%c1, %c0_24] : memref<16x128xf32, #tpu.memory_space<vmem>>, vector<1x32xf32>
    %c2 = arith.constant 2 : index
    %c0_25 = arith.constant 0 : index
    %162 = vector.load %arg4[%c2, %c0_25] : memref<16x128xf32, #tpu.memory_space<vmem>>, vector<1x32xf32>
    %cst_26 = arith.constant dense<0.000000e+00> : vector<6xf32>
    %163 = vector.multi_reduction <add>, %160, %cst_26 [1] : vector<6x32xf32> to vector<6xf32>
    %164 = vector.shape_cast %163 : vector<6xf32> to vector<6x1xf32>
    %cst_27 = arith.constant 3.200000e+01 : f32
    %165 = vector.broadcast %cst_27 : f32 to vector<6x1xf32>
    %166 = arith.divf %164, %165 : vector<6x1xf32>
    %167 = vector.broadcast %166 : vector<6x1xf32> to vector<6x32xf32>
    %168 = arith.subf %160, %167 : vector<6x32xf32>
    %169 = arith.mulf %168, %168 : vector<6x32xf32>
    %cst_28 = arith.constant dense<0.000000e+00> : vector<6xf32>
    %170 = vector.multi_reduction <add>, %169, %cst_28 [1] : vector<6x32xf32> to vector<6xf32>
    %171 = vector.shape_cast %170 : vector<6xf32> to vector<6x1xf32>
    %cst_29 = arith.constant 3.200000e+01 : f32
    %172 = vector.broadcast %cst_29 : f32 to vector<6x1xf32>
    %173 = arith.divf %171, %172 : vector<6x1xf32>
    %174 = vector.broadcast %166 : vector<6x1xf32> to vector<6x32xf32>
    %175 = arith.subf %160, %174 : vector<6x32xf32>
    %cst_30 = arith.constant 9.99999974E-6 : f32
    %176 = vector.broadcast %cst_30 : f32 to vector<6x1xf32>
    %177 = arith.addf %173, %176 : vector<6x1xf32>
    %178 = math.rsqrt %177 : vector<6x1xf32>
    %179 = vector.broadcast %178 : vector<6x1xf32> to vector<6x32xf32>
    %180 = arith.mulf %175, %179 : vector<6x32xf32>
    %181 = vector.broadcast %161 : vector<1x32xf32> to vector<6x32xf32>
    %182 = arith.mulf %180, %181 : vector<6x32xf32>
    %183 = vector.broadcast %162 : vector<1x32xf32> to vector<6x32xf32>
    %184 = arith.addf %182, %183 : vector<6x32xf32>
    %c40 = arith.constant 40 : index
    %c0_31 = arith.constant 0 : index
    %185 = vector.load %arg3[%c40, %c0_31] : memref<560x128xf32, #tpu.memory_space<vmem>>, vector<32x96xf32>
    %cst_32 = arith.constant dense<0.000000e+00> : vector<6x96xf32>
    %186 = tpu.matmul %184, %185, %cst_32 {dimension_numbers = #tpu.dot_dimension_numbers<[1], [0], [0], [1], [0, 0, 1, 1], [], []>} : vector<6x32xf32>, vector<32x96xf32>, vector<6x96xf32> -> vector<6x96xf32>
    %c0_33 = arith.constant 0 : index
    %c0_34 = arith.constant 0 : index
    %187 = vector.load %arg1[%c0_33, %c0_34] : memref<6x1xf32, #tpu.memory_space<vmem>>, vector<6x1xf32>
    %c0_35 = arith.constant 0 : index
    %c0_36 = arith.constant 0 : index
    %188 = vector.load %arg2[%c0_35, %c0_36] : memref<1x6xf32, #tpu.memory_space<vmem>>, vector<1x6xf32>
    %189 = vector.broadcast %187 : vector<6x1xf32> to vector<6x6xf32>
    %190 = vector.broadcast %188 : vector<1x6xf32> to vector<6x6xf32>
    %191 = arith.cmpf oeq, %189, %190 : vector<6x6xf32>
    %cst_37 = arith.constant 0.000000e+00 : f32
    %cst_38 = arith.constant -1.000000e+09 : f32
    %192 = vector.broadcast %cst_37 : f32 to vector<6x6xf32>
    %193 = vector.broadcast %cst_38 : f32 to vector<6x6xf32>
    %194 = arith.select %191, %192, %193 : vector<6x6xi1>, vector<6x6xf32>
    %195 = vector.extract_strided_slice %186 {offsets = [0, 0], sizes = [6, 8], strides = [1, 1]} : vector<6x96xf32> to vector<6x8xf32>
    %196 = vector.extract_strided_slice %186 {offsets = [0, 32], sizes = [6, 8], strides = [1, 1]} : vector<6x96xf32> to vector<6x8xf32>
    %197 = vector.extract_strided_slice %186 {offsets = [0, 64], sizes = [6, 8], strides = [1, 1]} : vector<6x96xf32> to vector<6x8xf32>
    %cst_39 = arith.constant dense<0.000000e+00> : vector<6x6xf32>
    %198 = tpu.matmul %195, %196, %cst_39 {dimension_numbers = #tpu.dot_dimension_numbers<[1], [1], [0], [0], [0, 0, 1, 0], [], []>} : vector<6x8xf32>, vector<6x8xf32>, vector<6x6xf32> -> vector<6x6xf32>
    %cst_40 = arith.constant 0.353553385 : f32
    %199 = vector.broadcast %cst_40 : f32 to vector<6x6xf32>
    %200 = arith.mulf %198, %199 : vector<6x6xf32>
    %201 = arith.addf %200, %194 : vector<6x6xf32>
    %cst_41 = arith.constant dense<0xFF800000> : vector<6xf32>
    %202 = vector.multi_reduction <maximumf>, %201, %cst_41 [1] : vector<6x6xf32> to vector<6xf32>
    %203 = vector.shape_cast %202 : vector<6xf32> to vector<6x1xf32>
    %204 = vector.broadcast %203 : vector<6x1xf32> to vector<6x6xf32>
    %205 = arith.subf %201, %204 : vector<6x6xf32>
    %206 = math.exp %205 : vector<6x6xf32>
    %cst_42 = arith.constant dense<0.000000e+00> : vector<6xf32>
    %207 = vector.multi_reduction <add>, %206, %cst_42 [1] : vector<6x6xf32> to vector<6xf32>
    %208 = vector.shape_cast %207 : vector<6xf32> to vector<6x1xf32>
    %209 = vector.broadcast %208 : vector<6x1xf32> to vector<6x6xf32>
    %210 = arith.divf %206, %209 : vector<6x6xf32>
    %cst_43 = arith.constant dense<0.000000e+00> : vector<6x8xf32>
    %211 = tpu.matmul %210, %197, %cst_43 {dimension_numbers = #tpu.dot_dimension_numbers<[1], [0], [0], [1], [0, 0, 1, 1], [], []>} : vector<6x6xf32>, vector<6x8xf32>, vector<6x8xf32> -> vector<6x8xf32>
    %212 = vector.extract_strided_slice %186 {offsets = [0, 8], sizes = [6, 8], strides = [1, 1]} : vector<6x96xf32> to vector<6x8xf32>
    %213 = vector.extract_strided_slice %186 {offsets = [0, 40], sizes = [6, 8], strides = [1, 1]} : vector<6x96xf32> to vector<6x8xf32>
    %214 = vector.extract_strided_slice %186 {offsets = [0, 72], sizes = [6, 8], strides = [1, 1]} : vector<6x96xf32> to vector<6x8xf32>
    %cst_44 = arith.constant dense<0.000000e+00> : vector<6x6xf32>
    %215 = tpu.matmul %212, %213, %cst_44 {dimension_numbers = #tpu.dot_dimension_numbers<[1], [1], [0], [0], [0, 0, 1, 0], [], []>} : vector<6x8xf32>, vector<6x8xf32>, vector<6x6xf32> -> vector<6x6xf32>
    %cst_45 = arith.constant 0.353553385 : f32
    %216 = vector.broadcast %cst_45 : f32 to vector<6x6xf32>
    %217 = arith.mulf %215, %216 : vector<6x6xf32>
    %218 = arith.addf %217, %194 : vector<6x6xf32>
    %cst_46 = arith.constant dense<0xFF800000> : vector<6xf32>
    %219 = vector.multi_reduction <maximumf>, %218, %cst_46 [1] : vector<6x6xf32> to vector<6xf32>
    %220 = vector.shape_cast %219 : vector<6xf32> to vector<6x1xf32>
    %221 = vector.broadcast %220 : vector<6x1xf32> to vector<6x6xf32>
    %222 = arith.subf %218, %221 : vector<6x6xf32>
    %223 = math.exp %222 : vector<6x6xf32>
    %cst_47 = arith.constant dense<0.000000e+00> : vector<6xf32>
    %224 = vector.multi_reduction <add>, %223, %cst_47 [1] : vector<6x6xf32> to vector<6xf32>
    %225 = vector.shape_cast %224 : vector<6xf32> to vector<6x1xf32>
    %226 = vector.broadcast %225 : vector<6x1xf32> to vector<6x6xf32>
    %227 = arith.divf %223, %226 : vector<6x6xf32>
    %cst_48 = arith.constant dense<0.000000e+00> : vector<6x8xf32>
    %228 = tpu.matmul %227, %214, %cst_48 {dimension_numbers = #tpu.dot_dimension_numbers<[1], [0], [0], [1], [0, 0, 1, 1], [], []>} : vector<6x6xf32>, vector<6x8xf32>, vector<6x8xf32> -> vector<6x8xf32>
    %229 = vector.extract_strided_slice %186 {offsets = [0, 16], sizes = [6, 8], strides = [1, 1]} : vector<6x96xf32> to vector<6x8xf32>
    %230 = vector.extract_strided_slice %186 {offsets = [0, 48], sizes = [6, 8], strides = [1, 1]} : vector<6x96xf32> to vector<6x8xf32>
    %231 = vector.extract_strided_slice %186 {offsets = [0, 80], sizes = [6, 8], strides = [1, 1]} : vector<6x96xf32> to vector<6x8xf32>
    %cst_49 = arith.constant dense<0.000000e+00> : vector<6x6xf32>
    %232 = tpu.matmul %229, %230, %cst_49 {dimension_numbers = #tpu.dot_dimension_numbers<[1], [1], [0], [0], [0, 0, 1, 0], [], []>} : vector<6x8xf32>, vector<6x8xf32>, vector<6x6xf32> -> vector<6x6xf32>
    %cst_50 = arith.constant 0.353553385 : f32
    %233 = vector.broadcast %cst_50 : f32 to vector<6x6xf32>
    %234 = arith.mulf %232, %233 : vector<6x6xf32>
    %235 = arith.addf %234, %194 : vector<6x6xf32>
    %cst_51 = arith.constant dense<0xFF800000> : vector<6xf32>
    %236 = vector.multi_reduction <maximumf>, %235, %cst_51 [1] : vector<6x6xf32> to vector<6xf32>
    %237 = vector.shape_cast %236 : vector<6xf32> to vector<6x1xf32>
    %238 = vector.broadcast %237 : vector<6x1xf32> to vector<6x6xf32>
    %239 = arith.subf %235, %238 : vector<6x6xf32>
    %240 = math.exp %239 : vector<6x6xf32>
    %cst_52 = arith.constant dense<0.000000e+00> : vector<6xf32>
    %241 = vector.multi_reduction <add>, %240, %cst_52 [1] : vector<6x6xf32> to vector<6xf32>
    %242 = vector.shape_cast %241 : vector<6xf32> to vector<6x1xf32>
    %243 = vector.broadcast %242 : vector<6x1xf32> to vector<6x6xf32>
    %244 = arith.divf %240, %243 : vector<6x6xf32>
    %cst_53 = arith.constant dense<0.000000e+00> : vector<6x8xf32>
    %245 = tpu.matmul %244, %231, %cst_53 {dimension_numbers = #tpu.dot_dimension_numbers<[1], [0], [0], [1], [0, 0, 1, 1], [], []>} : vector<6x6xf32>, vector<6x8xf32>, vector<6x8xf32> -> vector<6x8xf32>
    %246 = vector.extract_strided_slice %186 {offsets = [0, 24], sizes = [6, 8], strides = [1, 1]} : vector<6x96xf32> to vector<6x8xf32>
    %247 = vector.extract_strided_slice %186 {offsets = [0, 56], sizes = [6, 8], strides = [1, 1]} : vector<6x96xf32> to vector<6x8xf32>
    %248 = vector.extract_strided_slice %186 {offsets = [0, 88], sizes = [6, 8], strides = [1, 1]} : vector<6x96xf32> to vector<6x8xf32>
    %cst_54 = arith.constant dense<0.000000e+00> : vector<6x6xf32>
    %249 = tpu.matmul %246, %247, %cst_54 {dimension_numbers = #tpu.dot_dimension_numbers<[1], [1], [0], [0], [0, 0, 1, 0], [], []>} : vector<6x8xf32>, vector<6x8xf32>, vector<6x6xf32> -> vector<6x6xf32>
    %cst_55 = arith.constant 0.353553385 : f32
    %250 = vector.broadcast %cst_55 : f32 to vector<6x6xf32>
    %251 = arith.mulf %249, %250 : vector<6x6xf32>
    %252 = arith.addf %251, %194 : vector<6x6xf32>
    %cst_56 = arith.constant dense<0xFF800000> : vector<6xf32>
    %253 = vector.multi_reduction <maximumf>, %252, %cst_56 [1] : vector<6x6xf32> to vector<6xf32>
    %254 = vector.shape_cast %253 : vector<6xf32> to vector<6x1xf32>
    %255 = vector.broadcast %254 : vector<6x1xf32> to vector<6x6xf32>
    %256 = arith.subf %252, %255 : vector<6x6xf32>
    %257 = math.exp %256 : vector<6x6xf32>
    %cst_57 = arith.constant dense<0.000000e+00> : vector<6xf32>
    %258 = vector.multi_reduction <add>, %257, %cst_57 [1] : vector<6x6xf32> to vector<6xf32>
    %259 = vector.shape_cast %258 : vector<6xf32> to vector<6x1xf32>
    %260 = vector.broadcast %259 : vector<6x1xf32> to vector<6x6xf32>
    %261 = arith.divf %257, %260 : vector<6x6xf32>
    %cst_58 = arith.constant dense<0.000000e+00> : vector<6x8xf32>
    %262 = tpu.matmul %261, %248, %cst_58 {dimension_numbers = #tpu.dot_dimension_numbers<[1], [0], [0], [1], [0, 0, 1, 1], [], []>} : vector<6x6xf32>, vector<6x8xf32>, vector<6x8xf32> -> vector<6x8xf32>
    %263 = tpu.concatenate %211, %228, %245, %262 in 1 : vector<6x8xf32>, vector<6x8xf32>, vector<6x8xf32>, vector<6x8xf32> -> vector<6x32xf32>
    %c72 = arith.constant 72 : index
    %c0_59 = arith.constant 0 : index
    %264 = vector.load %arg3[%c72, %c0_59] : memref<560x128xf32, #tpu.memory_space<vmem>>, vector<32x32xf32>
    %cst_60 = arith.constant dense<0.000000e+00> : vector<6x32xf32>
    %265 = tpu.matmul %263, %264, %cst_60 {dimension_numbers = #tpu.dot_dimension_numbers<[1], [0], [0], [1], [0, 0, 1, 1], [], []>} : vector<6x32xf32>, vector<32x32xf32>, vector<6x32xf32> -> vector<6x32xf32>
    %266 = tpu.concatenate %184, %265 in 1 : vector<6x32xf32>, vector<6x32xf32> -> vector<6x64xf32>
    %c3 = arith.constant 3 : index
    %c0_61 = arith.constant 0 : index
    %267 = vector.load %arg4[%c3, %c0_61] : memref<16x128xf32, #tpu.memory_space<vmem>>, vector<1x64xf32>
    %c4 = arith.constant 4 : index
    %c0_62 = arith.constant 0 : index
    %268 = vector.load %arg4[%c4, %c0_62] : memref<16x128xf32, #tpu.memory_space<vmem>>, vector<1x64xf32>
    %cst_63 = arith.constant dense<0.000000e+00> : vector<6xf32>
    %269 = vector.multi_reduction <add>, %266, %cst_63 [1] : vector<6x64xf32> to vector<6xf32>
    %270 = vector.shape_cast %269 : vector<6xf32> to vector<6x1xf32>
    %cst_64 = arith.constant 6.400000e+01 : f32
    %271 = vector.broadcast %cst_64 : f32 to vector<6x1xf32>
    %272 = arith.divf %270, %271 : vector<6x1xf32>
    %273 = vector.broadcast %272 : vector<6x1xf32> to vector<6x64xf32>
    %274 = arith.subf %266, %273 : vector<6x64xf32>
    %275 = arith.mulf %274, %274 : vector<6x64xf32>
    %cst_65 = arith.constant dense<0.000000e+00> : vector<6xf32>
    %276 = vector.multi_reduction <add>, %275, %cst_65 [1] : vector<6x64xf32> to vector<6xf32>
    %277 = vector.shape_cast %276 : vector<6xf32> to vector<6x1xf32>
    %cst_66 = arith.constant 6.400000e+01 : f32
    %278 = vector.broadcast %cst_66 : f32 to vector<6x1xf32>
    %279 = arith.divf %277, %278 : vector<6x1xf32>
    %280 = vector.broadcast %272 : vector<6x1xf32> to vector<6x64xf32>
    %281 = arith.subf %266, %280 : vector<6x64xf32>
    %cst_67 = arith.constant 9.99999974E-6 : f32
    %282 = vector.broadcast %cst_67 : f32 to vector<6x1xf32>
    %283 = arith.addf %279, %282 : vector<6x1xf32>
    %284 = math.rsqrt %283 : vector<6x1xf32>
    %285 = vector.broadcast %284 : vector<6x1xf32> to vector<6x64xf32>
    %286 = arith.mulf %281, %285 : vector<6x64xf32>
    %287 = vector.broadcast %267 : vector<1x64xf32> to vector<6x64xf32>
    %288 = arith.mulf %286, %287 : vector<6x64xf32>
    %289 = vector.broadcast %268 : vector<1x64xf32> to vector<6x64xf32>
    %290 = arith.addf %288, %289 : vector<6x64xf32>
    %c104 = arith.constant 104 : index
    %c0_68 = arith.constant 0 : index
    %291 = vector.load %arg3[%c104, %c0_68] : memref<560x128xf32, #tpu.memory_space<vmem>>, vector<64x64xf32>
    %cst_69 = arith.constant dense<0.000000e+00> : vector<6x64xf32>
    %292 = tpu.matmul %290, %291, %cst_69 {dimension_numbers = #tpu.dot_dimension_numbers<[1], [0], [0], [1], [0, 0, 1, 1], [], []>} : vector<6x64xf32>, vector<64x64xf32>, vector<6x64xf32> -> vector<6x64xf32>
    %c5 = arith.constant 5 : index
    %c0_70 = arith.constant 0 : index
    %293 = vector.load %arg4[%c5, %c0_70] : memref<16x128xf32, #tpu.memory_space<vmem>>, vector<1x64xf32>
    %294 = vector.broadcast %293 : vector<1x64xf32> to vector<6x64xf32>
    %295 = arith.addf %292, %294 : vector<6x64xf32>
    %296 = math.tanh %295 : vector<6x64xf32>
    %c168 = arith.constant 168 : index
    %c0_71 = arith.constant 0 : index
    %297 = vector.load %arg3[%c168, %c0_71] : memref<560x128xf32, #tpu.memory_space<vmem>>, vector<64x32xf32>
    %cst_72 = arith.constant dense<0.000000e+00> : vector<6x32xf32>
    %298 = tpu.matmul %296, %297, %cst_72 {dimension_numbers = #tpu.dot_dimension_numbers<[1], [0], [0], [1], [0, 0, 1, 1], [], []>} : vector<6x64xf32>, vector<64x32xf32>, vector<6x32xf32> -> vector<6x32xf32>
    %c6 = arith.constant 6 : index
    %c0_73 = arith.constant 0 : index
    %299 = vector.load %arg4[%c6, %c0_73] : memref<16x128xf32, #tpu.memory_space<vmem>>, vector<1x32xf32>
    %300 = vector.broadcast %299 : vector<1x32xf32> to vector<6x32xf32>
    %301 = arith.addf %298, %300 : vector<6x32xf32>
    %302 = math.tanh %301 : vector<6x32xf32>
    %c42 = arith.constant 42 : index
    %c2_74 = arith.constant 2 : index
    %303 = vector.load %arg0[%c42, %c2_74] : memref<48x6xf32, #tpu.memory_space<vmem>>, vector<6x2xf32>
    %c232 = arith.constant 232 : index
    %c0_75 = arith.constant 0 : index
    %304 = vector.load %arg3[%c232, %c0_75] : memref<560x128xf32, #tpu.memory_space<vmem>>, vector<2x128xf32>
    %cst_76 = arith.constant dense<0.000000e+00> : vector<6x128xf32>
    %305 = tpu.matmul %303, %304, %cst_76 {dimension_numbers = #tpu.dot_dimension_numbers<[1], [0], [0], [1], [0, 0, 1, 1], [], []>} : vector<6x2xf32>, vector<2x128xf32>, vector<6x128xf32> -> vector<6x128xf32>
    %c7 = arith.constant 7 : index
    %c0_77 = arith.constant 0 : index
    %306 = vector.load %arg4[%c7, %c0_77] : memref<16x128xf32, #tpu.memory_space<vmem>>, vector<1x128xf32>
    %307 = vector.broadcast %306 : vector<1x128xf32> to vector<6x128xf32>
    %308 = arith.addf %305, %307 : vector<6x128xf32>
    %c240 = arith.constant 240 : index
    %c0_78 = arith.constant 0 : index
    %309 = vector.load %arg3[%c240, %c0_78] : memref<560x128xf32, #tpu.memory_space<vmem>>, vector<32x128xf32>
    %c272 = arith.constant 272 : index
    %c0_79 = arith.constant 0 : index
    %310 = vector.load %arg3[%c272, %c0_79] : memref<560x128xf32, #tpu.memory_space<vmem>>, vector<32x128xf32>
    %c8_80 = arith.constant 8 : index
    %c0_81 = arith.constant 0 : index
    %311 = vector.load %arg4[%c8_80, %c0_81] : memref<16x128xf32, #tpu.memory_space<vmem>>, vector<1x128xf32>
    %cst_82 = arith.constant 0.000000e+00 : f32
    %312 = vector.broadcast %cst_82 : f32 to vector<6x32xf32>
    %cst_83 = arith.constant dense<0.000000e+00> : vector<6x128xf32>
    %313 = tpu.matmul %302, %309, %cst_83 {dimension_numbers = #tpu.dot_dimension_numbers<[1], [0], [0], [1], [0, 0, 1, 1], [], []>} : vector<6x32xf32>, vector<32x128xf32>, vector<6x128xf32> -> vector<6x128xf32>
    %314 = arith.addf %308, %313 : vector<6x128xf32>
    %315 = vector.extract_strided_slice %314 {offsets = [0, 0], sizes = [6, 96], strides = [1, 1]} : vector<6x128xf32> to vector<6x96xf32>
    %316 = arith.negf %315 : vector<6x96xf32>
    %317 = math.exp %316 : vector<6x96xf32>
    %cst_84 = arith.constant 1.000000e+00 : f32
    %318 = vector.broadcast %cst_84 : f32 to vector<6x96xf32>
    %319 = arith.addf %318, %317 : vector<6x96xf32>
    %320 = arith.divf %318, %319 : vector<6x96xf32>
    %321 = vector.extract_strided_slice %314 {offsets = [0, 96], sizes = [6, 32], strides = [1, 1]} : vector<6x128xf32> to vector<6x32xf32>
    %322 = math.tanh %321 : vector<6x32xf32>
    %323 = vector.extract_strided_slice %320 {offsets = [0, 0], sizes = [6, 32], strides = [1, 1]} : vector<6x96xf32> to vector<6x32xf32>
    %324 = vector.extract_strided_slice %320 {offsets = [0, 32], sizes = [6, 32], strides = [1, 1]} : vector<6x96xf32> to vector<6x32xf32>
    %325 = vector.extract_strided_slice %320 {offsets = [0, 64], sizes = [6, 32], strides = [1, 1]} : vector<6x96xf32> to vector<6x32xf32>
    %326 = arith.mulf %324, %312 : vector<6x32xf32>
    %327 = arith.mulf %323, %322 : vector<6x32xf32>
    %328 = arith.addf %326, %327 : vector<6x32xf32>
    %329 = math.tanh %328 : vector<6x32xf32>
    %330 = arith.mulf %325, %329 : vector<6x32xf32>
    %c0_85 = arith.constant 0 : index
    %c0_86 = arith.constant 0 : index
    %331 = vector.load %arg6[%c0_85, %c0_86] : memref<6x256xf32, #tpu.memory_space<vmem>>, vector<6x32xf32>
    tpu.vector_store %arg6[%c0_85, %c0_86], %330 {strides = array<i32>} : memref<6x256xf32, #tpu.memory_space<vmem>>, vector<6x32xf32>,
    %cst_87 = arith.constant dense<0.000000e+00> : vector<6x128xf32>
    %332 = tpu.matmul %330, %310, %cst_87 {dimension_numbers = #tpu.dot_dimension_numbers<[1], [0], [0], [1], [0, 0, 1, 1], [], []>} : vector<6x32xf32>, vector<32x128xf32>, vector<6x128xf32> -> vector<6x128xf32>
    %333 = vector.broadcast %311 : vector<1x128xf32> to vector<6x128xf32>
    %334 = arith.addf %332, %333 : vector<6x128xf32>
    %335 = vector.extract_strided_slice %334 {offsets = [0, 0], sizes = [6, 96], strides = [1, 1]} : vector<6x128xf32> to vector<6x96xf32>
    %336 = arith.negf %335 : vector<6x96xf32>
    %337 = math.exp %336 : vector<6x96xf32>
    %cst_88 = arith.constant 1.000000e+00 : f32
    %338 = vector.broadcast %cst_88 : f32 to vector<6x96xf32>
    %339 = arith.addf %338, %337 : vector<6x96xf32>
    %340 = arith.divf %338, %339 : vector<6x96xf32>
    %341 = vector.extract_strided_slice %334 {offsets = [0, 96], sizes = [6, 32], strides = [1, 1]} : vector<6x128xf32> to vector<6x32xf32>
    %342 = math.tanh %341 : vector<6x32xf32>
    %343 = vector.extract_strided_slice %340 {offsets = [0, 0], sizes = [6, 32], strides = [1, 1]} : vector<6x96xf32> to vector<6x32xf32>
    %344 = vector.extract_strided_slice %340 {offsets = [0, 32], sizes = [6, 32], strides = [1, 1]} : vector<6x96xf32> to vector<6x32xf32>
    %345 = vector.extract_strided_slice %340 {offsets = [0, 64], sizes = [6, 32], strides = [1, 1]} : vector<6x96xf32> to vector<6x32xf32>
    %346 = arith.mulf %344, %328 : vector<6x32xf32>
    %347 = arith.mulf %343, %342 : vector<6x32xf32>
    %348 = arith.addf %346, %347 : vector<6x32xf32>
    %349 = math.tanh %348 : vector<6x32xf32>
    %350 = arith.mulf %345, %349 : vector<6x32xf32>
    %c0_89 = arith.constant 0 : index
    %c32 = arith.constant 32 : index
    %351 = vector.load %arg6[%c0_89, %c32] : memref<6x256xf32, #tpu.memory_space<vmem>>, vector<6x32xf32>
    tpu.vector_store %arg6[%c0_89, %c32], %350 {strides = array<i32>} : memref<6x256xf32, #tpu.memory_space<vmem>>, vector<6x32xf32>,
    %cst_90 = arith.constant dense<0.000000e+00> : vector<6x128xf32>
    %352 = tpu.matmul %350, %310, %cst_90 {dimension_numbers = #tpu.dot_dimension_numbers<[1], [0], [0], [1], [0, 0, 1, 1], [], []>} : vector<6x32xf32>, vector<32x128xf32>, vector<6x128xf32> -> vector<6x128xf32>
    %353 = vector.broadcast %311 : vector<1x128xf32> to vector<6x128xf32>
    %354 = arith.addf %352, %353 : vector<6x128xf32>
    %355 = vector.extract_strided_slice %354 {offsets = [0, 0], sizes = [6, 96], strides = [1, 1]} : vector<6x128xf32> to vector<6x96xf32>
    %356 = arith.negf %355 : vector<6x96xf32>
    %357 = math.exp %356 : vector<6x96xf32>
    %cst_91 = arith.constant 1.000000e+00 : f32
    %358 = vector.broadcast %cst_91 : f32 to vector<6x96xf32>
    %359 = arith.addf %358, %357 : vector<6x96xf32>
    %360 = arith.divf %358, %359 : vector<6x96xf32>
    %361 = vector.extract_strided_slice %354 {offsets = [0, 96], sizes = [6, 32], strides = [1, 1]} : vector<6x128xf32> to vector<6x32xf32>
    %362 = math.tanh %361 : vector<6x32xf32>
    %363 = vector.extract_strided_slice %360 {offsets = [0, 0], sizes = [6, 32], strides = [1, 1]} : vector<6x96xf32> to vector<6x32xf32>
    %364 = vector.extract_strided_slice %360 {offsets = [0, 32], sizes = [6, 32], strides = [1, 1]} : vector<6x96xf32> to vector<6x32xf32>
    %365 = vector.extract_strided_slice %360 {offsets = [0, 64], sizes = [6, 32], strides = [1, 1]} : vector<6x96xf32> to vector<6x32xf32>
    %366 = arith.mulf %364, %348 : vector<6x32xf32>
    %367 = arith.mulf %363, %362 : vector<6x32xf32>
    %368 = arith.addf %366, %367 : vector<6x32xf32>
    %369 = math.tanh %368 : vector<6x32xf32>
    %370 = arith.mulf %365, %369 : vector<6x32xf32>
    %c0_92 = arith.constant 0 : index
    %c64 = arith.constant 64 : index
    %371 = vector.load %arg6[%c0_92, %c64] : memref<6x256xf32, #tpu.memory_space<vmem>>, vector<6x32xf32>
    tpu.vector_store %arg6[%c0_92, %c64], %370 {strides = array<i32>} : memref<6x256xf32, #tpu.memory_space<vmem>>, vector<6x32xf32>,
    %cst_93 = arith.constant dense<0.000000e+00> : vector<6x128xf32>
    %372 = tpu.matmul %370, %310, %cst_93 {dimension_numbers = #tpu.dot_dimension_numbers<[1], [0], [0], [1], [0, 0, 1, 1], [], []>} : vector<6x32xf32>, vector<32x128xf32>, vector<6x128xf32> -> vector<6x128xf32>
    %373 = vector.broadcast %311 : vector<1x128xf32> to vector<6x128xf32>
    %374 = arith.addf %372, %373 : vector<6x128xf32>
    %375 = vector.extract_strided_slice %374 {offsets = [0, 0], sizes = [6, 96], strides = [1, 1]} : vector<6x128xf32> to vector<6x96xf32>
    %376 = arith.negf %375 : vector<6x96xf32>
    %377 = math.exp %376 : vector<6x96xf32>
    %cst_94 = arith.constant 1.000000e+00 : f32
    %378 = vector.broadcast %cst_94 : f32 to vector<6x96xf32>
    %379 = arith.addf %378, %377 : vector<6x96xf32>
    %380 = arith.divf %378, %379 : vector<6x96xf32>
    %381 = vector.extract_strided_slice %374 {offsets = [0, 96], sizes = [6, 32], strides = [1, 1]} : vector<6x128xf32> to vector<6x32xf32>
    %382 = math.tanh %381 : vector<6x32xf32>
    %383 = vector.extract_strided_slice %380 {offsets = [0, 0], sizes = [6, 32], strides = [1, 1]} : vector<6x96xf32> to vector<6x32xf32>
    %384 = vector.extract_strided_slice %380 {offsets = [0, 32], sizes = [6, 32], strides = [1, 1]} : vector<6x96xf32> to vector<6x32xf32>
    %385 = vector.extract_strided_slice %380 {offsets = [0, 64], sizes = [6, 32], strides = [1, 1]} : vector<6x96xf32> to vector<6x32xf32>
    %386 = arith.mulf %384, %368 : vector<6x32xf32>
    %387 = arith.mulf %383, %382 : vector<6x32xf32>
    %388 = arith.addf %386, %387 : vector<6x32xf32>
    %389 = math.tanh %388 : vector<6x32xf32>
    %390 = arith.mulf %385, %389 : vector<6x32xf32>
    %c0_95 = arith.constant 0 : index
    %c96 = arith.constant 96 : index
    %391 = vector.load %arg6[%c0_95, %c96] : memref<6x256xf32, #tpu.memory_space<vmem>>, vector<6x32xf32>
    tpu.vector_store %arg6[%c0_95, %c96], %390 {strides = array<i32>} : memref<6x256xf32, #tpu.memory_space<vmem>>, vector<6x32xf32>,
    %cst_96 = arith.constant dense<0.000000e+00> : vector<6x128xf32>
    %392 = tpu.matmul %390, %310, %cst_96 {dimension_numbers = #tpu.dot_dimension_numbers<[1], [0], [0], [1], [0, 0, 1, 1], [], []>} : vector<6x32xf32>, vector<32x128xf32>, vector<6x128xf32> -> vector<6x128xf32>
    %393 = vector.broadcast %311 : vector<1x128xf32> to vector<6x128xf32>
    %394 = arith.addf %392, %393 : vector<6x128xf32>
    %395 = vector.extract_strided_slice %394 {offsets = [0, 0], sizes = [6, 96], strides = [1, 1]} : vector<6x128xf32> to vector<6x96xf32>
    %396 = arith.negf %395 : vector<6x96xf32>
    %397 = math.exp %396 : vector<6x96xf32>
    %cst_97 = arith.constant 1.000000e+00 : f32
    %398 = vector.broadcast %cst_97 : f32 to vector<6x96xf32>
    %399 = arith.addf %398, %397 : vector<6x96xf32>
    %400 = arith.divf %398, %399 : vector<6x96xf32>
    %401 = vector.extract_strided_slice %394 {offsets = [0, 96], sizes = [6, 32], strides = [1, 1]} : vector<6x128xf32> to vector<6x32xf32>
    %402 = math.tanh %401 : vector<6x32xf32>
    %403 = vector.extract_strided_slice %400 {offsets = [0, 0], sizes = [6, 32], strides = [1, 1]} : vector<6x96xf32> to vector<6x32xf32>
    %404 = vector.extract_strided_slice %400 {offsets = [0, 32], sizes = [6, 32], strides = [1, 1]} : vector<6x96xf32> to vector<6x32xf32>
    %405 = vector.extract_strided_slice %400 {offsets = [0, 64], sizes = [6, 32], strides = [1, 1]} : vector<6x96xf32> to vector<6x32xf32>
    %406 = arith.mulf %404, %388 : vector<6x32xf32>
    %407 = arith.mulf %403, %402 : vector<6x32xf32>
    %408 = arith.addf %406, %407 : vector<6x32xf32>
    %409 = math.tanh %408 : vector<6x32xf32>
    %410 = arith.mulf %405, %409 : vector<6x32xf32>
    %c0_98 = arith.constant 0 : index
    %c128 = arith.constant 128 : index
    %411 = vector.load %arg6[%c0_98, %c128] : memref<6x256xf32, #tpu.memory_space<vmem>>, vector<6x32xf32>
    tpu.vector_store %arg6[%c0_98, %c128], %410 {strides = array<i32>} : memref<6x256xf32, #tpu.memory_space<vmem>>, vector<6x32xf32>,
    %cst_99 = arith.constant dense<0.000000e+00> : vector<6x128xf32>
    %412 = tpu.matmul %410, %310, %cst_99 {dimension_numbers = #tpu.dot_dimension_numbers<[1], [0], [0], [1], [0, 0, 1, 1], [], []>} : vector<6x32xf32>, vector<32x128xf32>, vector<6x128xf32> -> vector<6x128xf32>
    %413 = vector.broadcast %311 : vector<1x128xf32> to vector<6x128xf32>
    %414 = arith.addf %412, %413 : vector<6x128xf32>
    %415 = vector.extract_strided_slice %414 {offsets = [0, 0], sizes = [6, 96], strides = [1, 1]} : vector<6x128xf32> to vector<6x96xf32>
    %416 = arith.negf %415 : vector<6x96xf32>
    %417 = math.exp %416 : vector<6x96xf32>
    %cst_100 = arith.constant 1.000000e+00 : f32
    %418 = vector.broadcast %cst_100 : f32 to vector<6x96xf32>
    %419 = arith.addf %418, %417 : vector<6x96xf32>
    %420 = arith.divf %418, %419 : vector<6x96xf32>
    %421 = vector.extract_strided_slice %414 {offsets = [0, 96], sizes = [6, 32], strides = [1, 1]} : vector<6x128xf32> to vector<6x32xf32>
    %422 = math.tanh %421 : vector<6x32xf32>
    %423 = vector.extract_strided_slice %420 {offsets = [0, 0], sizes = [6, 32], strides = [1, 1]} : vector<6x96xf32> to vector<6x32xf32>
    %424 = vector.extract_strided_slice %420 {offsets = [0, 32], sizes = [6, 32], strides = [1, 1]} : vector<6x96xf32> to vector<6x32xf32>
    %425 = vector.extract_strided_slice %420 {offsets = [0, 64], sizes = [6, 32], strides = [1, 1]} : vector<6x96xf32> to vector<6x32xf32>
    %426 = arith.mulf %424, %408 : vector<6x32xf32>
    %427 = arith.mulf %423, %422 : vector<6x32xf32>
    %428 = arith.addf %426, %427 : vector<6x32xf32>
    %429 = math.tanh %428 : vector<6x32xf32>
    %430 = arith.mulf %425, %429 : vector<6x32xf32>
    %c0_101 = arith.constant 0 : index
    %c160 = arith.constant 160 : index
    %431 = vector.load %arg6[%c0_101, %c160] : memref<6x256xf32, #tpu.memory_space<vmem>>, vector<6x32xf32>
    tpu.vector_store %arg6[%c0_101, %c160], %430 {strides = array<i32>} : memref<6x256xf32, #tpu.memory_space<vmem>>, vector<6x32xf32>,
    %cst_102 = arith.constant dense<0.000000e+00> : vector<6x128xf32>
    %432 = tpu.matmul %430, %310, %cst_102 {dimension_numbers = #tpu.dot_dimension_numbers<[1], [0], [0], [1], [0, 0, 1, 1], [], []>} : vector<6x32xf32>, vector<32x128xf32>, vector<6x128xf32> -> vector<6x128xf32>
    %433 = vector.broadcast %311 : vector<1x128xf32> to vector<6x128xf32>
    %434 = arith.addf %432, %433 : vector<6x128xf32>
    %435 = vector.extract_strided_slice %434 {offsets = [0, 0], sizes = [6, 96], strides = [1, 1]} : vector<6x128xf32> to vector<6x96xf32>
    %436 = arith.negf %435 : vector<6x96xf32>
    %437 = math.exp %436 : vector<6x96xf32>
    %cst_103 = arith.constant 1.000000e+00 : f32
    %438 = vector.broadcast %cst_103 : f32 to vector<6x96xf32>
    %439 = arith.addf %438, %437 : vector<6x96xf32>
    %440 = arith.divf %438, %439 : vector<6x96xf32>
    %441 = vector.extract_strided_slice %434 {offsets = [0, 96], sizes = [6, 32], strides = [1, 1]} : vector<6x128xf32> to vector<6x32xf32>
    %442 = math.tanh %441 : vector<6x32xf32>
    %443 = vector.extract_strided_slice %440 {offsets = [0, 0], sizes = [6, 32], strides = [1, 1]} : vector<6x96xf32> to vector<6x32xf32>
    %444 = vector.extract_strided_slice %440 {offsets = [0, 32], sizes = [6, 32], strides = [1, 1]} : vector<6x96xf32> to vector<6x32xf32>
    %445 = vector.extract_strided_slice %440 {offsets = [0, 64], sizes = [6, 32], strides = [1, 1]} : vector<6x96xf32> to vector<6x32xf32>
    %446 = arith.mulf %444, %428 : vector<6x32xf32>
    %447 = arith.mulf %443, %442 : vector<6x32xf32>
    %448 = arith.addf %446, %447 : vector<6x32xf32>
    %449 = math.tanh %448 : vector<6x32xf32>
    %450 = arith.mulf %445, %449 : vector<6x32xf32>
    %c0_104 = arith.constant 0 : index
    %c192 = arith.constant 192 : index
    %451 = vector.load %arg6[%c0_104, %c192] : memref<6x256xf32, #tpu.memory_space<vmem>>, vector<6x32xf32>
    tpu.vector_store %arg6[%c0_104, %c192], %450 {strides = array<i32>} : memref<6x256xf32, #tpu.memory_space<vmem>>, vector<6x32xf32>,
    %cst_105 = arith.constant dense<0.000000e+00> : vector<6x128xf32>
    %452 = tpu.matmul %450, %310, %cst_105 {dimension_numbers = #tpu.dot_dimension_numbers<[1], [0], [0], [1], [0, 0, 1, 1], [], []>} : vector<6x32xf32>, vector<32x128xf32>, vector<6x128xf32> -> vector<6x128xf32>
    %453 = vector.broadcast %311 : vector<1x128xf32> to vector<6x128xf32>
    %454 = arith.addf %452, %453 : vector<6x128xf32>
    %455 = vector.extract_strided_slice %454 {offsets = [0, 0], sizes = [6, 96], strides = [1, 1]} : vector<6x128xf32> to vector<6x96xf32>
    %456 = arith.negf %455 : vector<6x96xf32>
    %457 = math.exp %456 : vector<6x96xf32>
    %cst_106 = arith.constant 1.000000e+00 : f32
    %458 = vector.broadcast %cst_106 : f32 to vector<6x96xf32>
    %459 = arith.addf %458, %457 : vector<6x96xf32>
    %460 = arith.divf %458, %459 : vector<6x96xf32>
    %461 = vector.extract_strided_slice %454 {offsets = [0, 96], sizes = [6, 32], strides = [1, 1]} : vector<6x128xf32> to vector<6x32xf32>
    %462 = math.tanh %461 : vector<6x32xf32>
    %463 = vector.extract_strided_slice %460 {offsets = [0, 0], sizes = [6, 32], strides = [1, 1]} : vector<6x96xf32> to vector<6x32xf32>
    %464 = vector.extract_strided_slice %460 {offsets = [0, 32], sizes = [6, 32], strides = [1, 1]} : vector<6x96xf32> to vector<6x32xf32>
    %465 = vector.extract_strided_slice %460 {offsets = [0, 64], sizes = [6, 32], strides = [1, 1]} : vector<6x96xf32> to vector<6x32xf32>
    %466 = arith.mulf %464, %448 : vector<6x32xf32>
    %467 = arith.mulf %463, %462 : vector<6x32xf32>
    %468 = arith.addf %466, %467 : vector<6x32xf32>
    %469 = math.tanh %468 : vector<6x32xf32>
    %470 = arith.mulf %465, %469 : vector<6x32xf32>
    %c0_107 = arith.constant 0 : index
    %c224 = arith.constant 224 : index
    %471 = vector.load %arg6[%c0_107, %c224] : memref<6x256xf32, #tpu.memory_space<vmem>>, vector<6x32xf32>
    tpu.vector_store %arg6[%c0_107, %c224], %470 {strides = array<i32>} : memref<6x256xf32, #tpu.memory_space<vmem>>, vector<6x32xf32>,
    %c0_108 = arith.constant 0 : index
    %c0_109 = arith.constant 0 : index
    %472 = vector.load %arg6[%c0_108, %c0_109] : memref<6x256xf32, #tpu.memory_space<vmem>>, vector<6x256xf32>
    %c304 = arith.constant 304 : index
    %c0_110 = arith.constant 0 : index
    %473 = vector.load %arg3[%c304, %c0_110] : memref<560x128xf32, #tpu.memory_space<vmem>>, vector<256x16xf32>
    %cst_111 = arith.constant dense<0.000000e+00> : vector<6x16xf32>
    %474 = tpu.matmul %472, %473, %cst_111 {dimension_numbers = #tpu.dot_dimension_numbers<[1], [0], [0], [1], [0, 0, 1, 1], [], []>} : vector<6x256xf32>, vector<256x16xf32>, vector<6x16xf32> -> vector<6x16xf32>
    %c9 = arith.constant 9 : index
    %c0_112 = arith.constant 0 : index
    %475 = vector.load %arg4[%c9, %c0_112] : memref<16x128xf32, #tpu.memory_space<vmem>>, vector<1x16xf32>
    %476 = vector.broadcast %475 : vector<1x16xf32> to vector<6x16xf32>
    %477 = arith.addf %474, %476 : vector<6x16xf32>
    %c0_113 = arith.constant 0 : index
    %c0_114 = arith.constant 0 : index
    %478 = vector.load %arg5[%c0_113, %c0_114] : memref<6x16xf32, #tpu.memory_space<vmem>>, vector<6x16xf32>
    tpu.vector_store %arg5[%c0_113, %c0_114], %477 {strides = array<i32>} : memref<6x16xf32, #tpu.memory_space<vmem>>, vector<6x16xf32>,
    return
  }
}

</mosaic_0001>

<llo_original>
// kernel: _lambda_.1
$region0: #{_lambda_.1}
  #allocation0 [shape = 'u32[]', space=smem, size = 0x4, offset = 0x4, fixed_abs, tag = 'smem constant byte address 0x4 - core index']
  #allocation1 [shape = 'u32[72,128]{1,0:T(1,128)}', space=vmem, size = 0x9000, scoped, tag = 'internal scratch']
  #allocation2 [shape = 'f32[6,256]{1,0:T(8,128)}', space=vmem, size = 0x2000, scoped, tag = 'scratch operand']
  %s0 = inlined_call_operand.vmem [shape: f32[48,6], index: 0, kind: input, shape index: {}]
  %s1 = inlined_call_operand.vmem [shape: f32[6,1], index: 1, kind: input, shape index: {}]
  %s2 = inlined_call_operand.vmem [shape: f32[1,6], index: 2, kind: input, shape index: {}]
  %s3 = inlined_call_operand.hbm [shape: f32[560,128], index: 3, kind: input, shape index: {}]
  %s4 = inlined_call_operand.vmem [shape: f32[16,128], index: 4, kind: input, shape index: {}]
  %s5 = inlined_call_operand.vmem [shape: f32[6,16], index: 5, kind: output, shape index: {}]
  %s6 = sld [smem:[#allocation0]]
  $region34: #{_lambda_.1} parent=0
    _
  %s8 = ssub.s32 1, %s6
  %s9 = scalar_select 0, %s8, %s6
  $region1: #{_lambda_.1} parent=0
    #allocation3 [shape = 'u8[286720]{0}', space=vmem, size = 0x46000, scoped, tag = 'input window, operand 3, single buffered']
    #allocation4 [shape = 's32[1]{0}', space=sflag, size = 0x4, scoped, tag = 'scoped memory for _lambda_.1']
    %10 = vsyncpa [#allocation4], 0
    // Predicated region
    $region2: #{_lambda_.1} parent=1 // pred_check
      _
    $region3: #{_lambda_.1} parent=1 // pred_check_branch
      %12 = sbr.rel (0) target = $region5
    $region4: #{_lambda_.1} parent=1 // pred_region
      _
    $region5: #{_lambda_.1} parent=1 // pred_fallthru
      _
    // Predicated region
    $region6: #{_lambda_.1} parent=1 // pred_check
      _
    $region7: #{_lambda_.1} parent=1 // pred_check_branch
      %14 = sbr.rel (0) target = $region9
    $region8: #{_lambda_.1} parent=1 // pred_region
      _
    $region9: #{_lambda_.1} parent=1 // pred_fallthru
      _
    // Predicated region
    $region10: #{_lambda_.1} parent=1 // pred_check
      _
    $region11: #{_lambda_.1} parent=1 // pred_check_branch
      %16 = sbr.rel (0) target = $region13
    $region12: #{_lambda_.1} parent=1 // pred_region
      _
    $region13: #{_lambda_.1} parent=1 // pred_fallthru
      _
    // Predicated region
    $region14: #{_lambda_.1} parent=1 // pred_check
      _
    $region15: #{_lambda_.1} parent=1 // pred_check_branch
      %18 = sbr.rel (0) target = $region17
    $region16: #{_lambda_.1} parent=1 // pred_region
      %20 = vsyncadd [#allocation4], 0
      %s21 = sshll.u32 %s3, 4
      %s22 = int_to_ptr.hbm [resolvable:$true] %s21
      %s23 = sshll.u32 [#allocation3], 4
      %s24 = int_to_ptr.vmem [resolvable:$true] %s23
      %29 = dma.hbm_to_vmem [thread:$0]  %s22, 8960, %s24, [#allocation4], 128, 128, 8
    $region17: #{_lambda_.1} parent=1 // pred_fallthru
      _
    // Predicated region
    $region18: #{_lambda_.1} parent=1 // pred_check
      _
    $region19: #{_lambda_.1} parent=1 // pred_check_branch
      %31 = sbr.rel (0) target = $region21
    $region20: #{_lambda_.1} parent=1 // pred_region
      _
    $region21: #{_lambda_.1} parent=1 // pred_fallthru
      _
    // Predicated region
    $region22: #{_lambda_.1} parent=1 // pred_check
      _
    $region23: #{_lambda_.1} parent=1 // pred_check_branch
      %33 = sbr.rel (0) target = $region25
    $region24: #{_lambda_.1} parent=1 // pred_region
      %35 = dma.done [#allocation4], 8960
    $region25: #{_lambda_.1} parent=1 // pred_fallthru
      _
    %v36 = vld [vmem:[%s0] sm:$0xff]
    %v37 = vld [vmem:[%s0 + $0x8] sm:$0xff]
    %v38 = vld [vmem:[%s0 + $0x10] sm:$0xff]
    %v39 = vld [vmem:[%s0 + $0x18] sm:$0xff]
    %v40 = vld [vmem:[%s0 + $0x20] sm:$0xff]
    %v41 = vld [vmem:[%s0 + $0x28] sm:$0xff]
    %v42 = vld [vmem:[#allocation3] sm:$0x3f]
    %v43 = vld [vmem:[%s4] sm:$0x1]
    %v44 = vperm.slane %v43, 0
    %vm45 = vcmask 48128
    %v47 = vsel %vm45, %v36, 0
    %v50 = vsel %vm45, %v37, 0
    %v53 = vsel %vm45, %v38, 0
    %v56 = vsel %vm45, %v39, 0
    %v59 = vsel %vm45, %v40, 0
    %v62 = vsel %vm45, %v41, 0
    %vm64 = vcmask 1045504
    %v66 = vsel %vm64, %v42, 0
    %68 = vmatpush.msra.mxu0 0.0
    %69 = vmatpush.msra.mxu0 0.0
    %70 = vmatpush.msra.mxu0 0.0
    %71 = vmatpush.msra.mxu0 0.0
    %72 = vmatpush.msra.mxu0 0.0
    %73 = vmatpush.msra.mxu0 0.0
    %74 = vmatpush.msra.mxu0 0.0
    %75 = vmatpush.msra.mxu0 0.0
    %76 = vmatpush.msra.mxu0 0.0
    %77 = vmatpush.msra.mxu0 0.0
    %78 = vmatpush.msra.mxu0 0.0
    %79 = vmatpush.msra.mxu0 0.0
    %80 = vmatpush.msra.mxu0 0.0
    %81 = vmatpush.msra.mxu0 0.0
    %82 = vmatpush.msra.mxu0 0.0
    %83 = vmatpush.msra.mxu0 %v66
    %84 = vmatmul.f32.gmra.mxu0 %v47
    %v85 = vpop.f32.mrf.mxu0
    %v86 = vadd.f32 %v44, %v85
    %87 = vmatmul.f32.gmra.mxu0 %v50
    %v88 = vpop.f32.mrf.mxu0
    %v89 = vadd.f32 %v44, %v88
    %90 = vmatmul.f32.gmra.mxu0 %v53
    %v91 = vpop.f32.mrf.mxu0
    %v92 = vadd.f32 %v44, %v91
    %93 = vmatmul.f32.gmra.mxu0 %v56
    %v94 = vpop.f32.mrf.mxu0
    %v95 = vadd.f32 %v44, %v94
    %96 = vmatmul.f32.gmra.mxu0 %v59
    %v97 = vpop.f32.mrf.mxu0
    %v98 = vadd.f32 %v44, %v97
    %99 = vmatmul.f32.gmra.mxu0 %v62
    %v100 = vpop.f32.mrf.mxu0
    %v101 = vadd.f32 %v44, %v100
    %102 = vdwg.mxu0
    %v103 = vld [vmem:[#allocation3 + $0x8] sm:$0xff]
    %v104 = vld [vmem:[#allocation3 + $0x10] sm:$0xff]
    %v105 = vld [vmem:[#allocation3 + $0x18] sm:$0xff]
    %v106 = vld [vmem:[#allocation3 + $0x20] sm:$0xff]
    %vm107 = vcmask 261120
    %v109 = vsel %vm107, 0.0, 0
    %111 = vmatpush.msra.mxu0 0.0
    %112 = vmatpush.msra.mxu0 0.0
    %113 = vmatpush.msra.mxu0 0.0
    %114 = vmatpush.msra.mxu0 0.0
    %115 = vmatpush.msra.mxu0 0.0
    %116 = vmatpush.msra.mxu0 0.0
    %117 = vmatpush.msra.mxu0 0.0
    %118 = vmatpush.msra.mxu0 0.0
    %119 = vmatpush.msra.mxu0 0.0
    %120 = vmatpush.msra.mxu0 0.0
    %121 = vmatpush.msra.mxu0 0.0
    %122 = vmatpush.msra.mxu0 0.0
    %123 = vmatpush.msra.mxu0 %v106
    %124 = vmatpush.msra.mxu0 %v105
    %125 = vmatpush.msra.mxu0 %v104
    %126 = vmatpush.msra.mxu0 %v103
    %127 = vmatmul.f32.gmra.mxu0 %v109
    %v128 = vpop.f32.mrf.mxu0
    %v129 = vadd.f32 0.0, %v128
    %130 = vdwg.mxu0
    %v131 = vadd.f32 %v86, %v129
    %v132 = vxor.u32 %v131, 2147483648
    %v133 = vmul.f32 %v132, 1.442695
    %v134 = vpow.pop %v133
    %v135 = vadd.f32 %v134, 1.0
    %v136 = vrcp.pop %v135
    %v137 = vmul.f32 %v135, %v136
    %v138 = vsub.f32 1.0, %v137
    %v139 = vmul.f32 %v136, %v138
    %v140 = vadd.f32 %v136, %v139
    %vm141 = vweird.f32 %v135
    %vm142 = vweird.f32 %v136
    %vm143 = vmor %vm141, %vm142
    %v144 = vsel %vm143, %v136, %v140
    %v145 = vand.u32 2147483647, %v135
    %vm146 = vcmp.eq.f32.partialorder %v145, 8.507059e+37
    %v147 = vand.u32 %v135, 2147483648
    %v148 = vor.u32 1.1754944e-38, %v147
    %v149 = vsel %vm146, %v148, %v144
    %v150 = vmul.f32 1.0, %v149
    %v151 = vtanh.pop %v131
    %v152 = vmul.f32 %v150, 0.0
    %154 = vrot.lane.b32.xlu0 %v151, 32
    %v155 = vpop.permute.xlu0 %154
    %v157 = vmul.f32 %v150, %v155
    %159 = vrot.lane.b32.xlu0 %v157, 32
    %v160 = vpop.permute.xlu0 %159
    %v162 = vadd.f32 %v152, %v160
    %v163 = vtanh.pop %v162
    %165 = vrot.lane.b32.xlu0 %v163, 32
    %v166 = vpop.permute.xlu0 %165
    %v168 = vmul.f32 %v150, %v166
    %170 = vrot.lane.b32.xlu0 %v168, 64
    %v171 = vpop.permute.xlu0 %170
    %v172 = vsel %vm107, %v171, 0
    %174 = vmatpush.msra.mxu0 0.0
    %175 = vmatpush.msra.mxu0 0.0
    %176 = vmatpush.msra.mxu0 0.0
    %177 = vmatpush.msra.mxu0 0.0
    %178 = vmatpush.msra.mxu0 0.0
    %179 = vmatpush.msra.mxu0 0.0
    %180 = vmatpush.msra.mxu0 0.0
    %181 = vmatpush.msra.mxu0 0.0
    %182 = vmatpush.msra.mxu0 0.0
    %183 = vmatpush.msra.mxu0 0.0
    %184 = vmatpush.msra.mxu0 0.0
    %185 = vmatpush.msra.mxu0 0.0
    %186 = vmatpush.msra.mxu0 %v106
    %187 = vmatpush.msra.mxu0 %v105
    %188 = vmatpush.msra.mxu0 %v104
    %189 = vmatpush.msra.mxu0 %v103
    %190 = vmatmul.f32.gmra.mxu0 %v172
    %v191 = vpop.f32.mrf.mxu0
    %v192 = vadd.f32 0.0, %v191
    %193 = vdwg.mxu0
    %v195 = vrot.slane %v192, 2
    %v197 = vadd.f32 %v86, %v195
    %v198 = vadd.f32 %v89, %v195
    %v199 = vxor.u32 %v197, 2147483648
    %v200 = vxor.u32 %v198, 2147483648
    %v201 = vmul.f32 %v199, 1.442695
    %v202 = vpow.pop %v201
    %v203 = vmul.f32 %v200, 1.442695
    %v204 = vpow.pop %v203
    %v205 = vadd.f32 %v202, 1.0
    %v206 = vadd.f32 %v204, 1.0
    %v207 = vrcp.pop %v205
    %v208 = vmul.f32 %v205, %v207
    %v209 = vsub.f32 1.0, %v208
    %v210 = vmul.f32 %v207, %v209
    %v211 = vadd.f32 %v207, %v210
    %vm212 = vweird.f32 %v205
    %vm213 = vweird.f32 %v207
    %vm214 = vmor %vm212, %vm213
    %v215 = vsel %vm214, %v207, %v211
    %v216 = vand.u32 2147483647, %v205
    %vm217 = vcmp.eq.f32.partialorder %v216, 8.507059e+37
    %v218 = vand.u32 %v205, 2147483648
    %v219 = vor.u32 1.1754944e-38, %v218
    %v220 = vsel %vm217, %v219, %v215
    %v221 = vmul.f32 1.0, %v220
    %v222 = vrcp.pop %v206
    %v223 = vmul.f32 %v206, %v222
    %v224 = vsub.f32 1.0, %v223
    %v225 = vmul.f32 %v222, %v224
    %v226 = vadd.f32 %v222, %v225
    %vm227 = vweird.f32 %v206
    %vm228 = vweird.f32 %v222
    %vm229 = vmor %vm227, %vm228
    %v230 = vsel %vm229, %v222, %v226
    %v231 = vand.u32 2147483647, %v206
    %vm232 = vcmp.eq.f32.partialorder %v231, 8.507059e+37
    %v233 = vand.u32 %v206, 2147483648
    %v234 = vor.u32 1.1754944e-38, %v233
    %v235 = vsel %vm232, %v234, %v230
    %v236 = vmul.f32 1.0, %v235
    %v237 = vtanh.pop %v197
    %v238 = vtanh.pop %v198
    %v240 = vrot.slane %v162, 2
    %v242 = vmul.f32 %v221, %v240
    %v243 = vmul.f32 %v236, %v240
    %246 = vrot.lane.b32.xlu0 %v237, 32
    %v247 = vpop.permute.xlu0 %246
    %248 = vrot.lane.b32.xlu0 %v238, 32
    %v249 = vpop.permute.xlu0 %248
    %v252 = vmul.f32 %v221, %v247
    %v253 = vmul.f32 %v236, %v249
    %256 = vrot.lane.b32.xlu0 %v252, 32
    %v257 = vpop.permute.xlu0 %256
    %258 = vrot.lane.b32.xlu0 %v253, 32
    %v259 = vpop.permute.xlu0 %258
    %v262 = vadd.f32 %v242, %v257
    %v263 = vadd.f32 %v243, %v259
    %v264 = vtanh.pop %v262
    %v265 = vtanh.pop %v263
    %268 = vrot.lane.b32.xlu0 %v264, 32
    %v269 = vpop.permute.xlu0 %268
    %270 = vrot.lane.b32.xlu0 %v265, 32
    %v271 = vpop.permute.xlu0 %270
    %v274 = vmul.f32 %v221, %v269
    %v275 = vmul.f32 %v236, %v271
    %vm278 = vcmask 1041408
    %v279 = vrot.slane %v274, 6
    %v280 = vrot.slane %v275, 6
    %v281 = vsel %vm278, %v279, %v280
    %282 = vrot.lane.b32.xlu0 %v281, 64
    %v283 = vpop.permute.xlu0 %282
    %v284 = vsel %vm107, %v283, 0
    %286 = vmatpush.msra.mxu0 0.0
    %287 = vmatpush.msra.mxu0 0.0
    %288 = vmatpush.msra.mxu0 0.0
    %289 = vmatpush.msra.mxu0 0.0
    %290 = vmatpush.msra.mxu0 0.0
    %291 = vmatpush.msra.mxu0 0.0
    %292 = vmatpush.msra.mxu0 0.0
    %293 = vmatpush.msra.mxu0 0.0
    %294 = vmatpush.msra.mxu0 0.0
    %295 = vmatpush.msra.mxu0 0.0
    %296 = vmatpush.msra.mxu0 0.0
    %297 = vmatpush.msra.mxu0 0.0
    %298 = vmatpush.msra.mxu0 %v106
    %299 = vmatpush.msra.mxu0 %v105
    %300 = vmatpush.msra.mxu0 %v104
    %301 = vmatpush.msra.mxu0 %v103
    %302 = vmatmul.f32.gmra.mxu0 %v284
    %v303 = vpop.f32.mrf.mxu0
    %v304 = vadd.f32 0.0, %v303
    %305 = vdwg.mxu0
    %v307 = vrot.slane %v304, 4
    %v309 = vadd.f32 %v89, %v307
    %v310 = vadd.f32 %v92, %v307
    %v311 = vxor.u32 %v309, 2147483648
    %v312 = vxor.u32 %v310, 2147483648
    %v313 = vmul.f32 %v311, 1.442695
    %v314 = vpow.pop %v313
    %v315 = vmul.f32 %v312, 1.442695
    %v316 = vpow.pop %v315
    %v317 = vadd.f32 %v314, 1.0
    %v318 = vadd.f32 %v316, 1.0
    %v319 = vrcp.pop %v317
    %v320 = vmul.f32 %v317, %v319
    %v321 = vsub.f32 1.0, %v320
    %v322 = vmul.f32 %v319, %v321
    %v323 = vadd.f32 %v319, %v322
    %vm324 = vweird.f32 %v317
    %vm325 = vweird.f32 %v319
    %vm326 = vmor %vm324, %vm325
    %v327 = vsel %vm326, %v319, %v323
    %v328 = vand.u32 2147483647, %v317
    %vm329 = vcmp.eq.f32.partialorder %v328, 8.507059e+37
    %v330 = vand.u32 %v317, 2147483648
    %v331 = vor.u32 1.1754944e-38, %v330
    %v332 = vsel %vm329, %v331, %v327
    %v333 = vmul.f32 1.0, %v332
    %v334 = vrcp.pop %v318
    %v335 = vmul.f32 %v318, %v334
    %v336 = vsub.f32 1.0, %v335
    %v337 = vmul.f32 %v334, %v336
    %v338 = vadd.f32 %v334, %v337
    %vm339 = vweird.f32 %v318
    %vm340 = vweird.f32 %v334
    %vm341 = vmor %vm339, %vm340
    %v342 = vsel %vm341, %v334, %v338
    %v343 = vand.u32 2147483647, %v318
    %vm344 = vcmp.eq.f32.partialorder %v343, 8.507059e+37
    %v345 = vand.u32 %v318, 2147483648
    %v346 = vor.u32 1.1754944e-38, %v345
    %v347 = vsel %vm344, %v346, %v342
    %v348 = vmul.f32 1.0, %v347
    %v349 = vtanh.pop %v309
    %v350 = vtanh.pop %v310
    %v353 = vrot.slane %v262, 2
    %v354 = vrot.slane %v263, 2
    %v355 = vsel %vm64, %v353, %v354
    %v358 = vmul.f32 %v333, %v355
    %v359 = vmul.f32 %v348, %v354
    %362 = vrot.lane.b32.xlu0 %v349, 32
    %v363 = vpop.permute.xlu0 %362
    %364 = vrot.lane.b32.xlu0 %v350, 32
    %v365 = vpop.permute.xlu0 %364
    %v368 = vmul.f32 %v333, %v363
    %v369 = vmul.f32 %v348, %v365
    %372 = vrot.lane.b32.xlu0 %v368, 32
    %v373 = vpop.permute.xlu0 %372
    %374 = vrot.lane.b32.xlu0 %v369, 32
    %v375 = vpop.permute.xlu0 %374
    %v378 = vadd.f32 %v358, %v373
    %v379 = vadd.f32 %v359, %v375
    %v380 = vtanh.pop %v378
    %v381 = vtanh.pop %v379
    %384 = vrot.lane.b32.xlu0 %v380, 32
    %v385 = vpop.permute.xlu0 %384
    %386 = vrot.lane.b32.xlu0 %v381, 32
    %v387 = vpop.permute.xlu0 %386
    %v390 = vmul.f32 %v333, %v385
    %v391 = vmul.f32 %v348, %v387
    %vm394 = vcmask 1043456
    %v395 = vrot.slane %v390, 4
    %v396 = vrot.slane %v391, 4
    %v397 = vsel %vm394, %v395, %v396
    %398 = vrot.lane.b32.xlu0 %v397, 64
    %v399 = vpop.permute.xlu0 %398
    %v400 = vsel %vm107, %v399, 0
    %402 = vmatpush.msra.mxu0 0.0
    %403 = vmatpush.msra.mxu0 0.0
    %404 = vmatpush.msra.mxu0 0.0
    %405 = vmatpush.msra.mxu0 0.0
    %406 = vmatpush.msra.mxu0 0.0
    %407 = vmatpush.msra.mxu0 0.0
    %408 = vmatpush.msra.mxu0 0.0
    %409 = vmatpush.msra.mxu0 0.0
    %410 = vmatpush.msra.mxu0 0.0
    %411 = vmatpush.msra.mxu0 0.0
    %412 = vmatpush.msra.mxu0 0.0
    %413 = vmatpush.msra.mxu0 0.0
    %414 = vmatpush.msra.mxu0 %v106
    %415 = vmatpush.msra.mxu0 %v105
    %416 = vmatpush.msra.mxu0 %v104
    %417 = vmatpush.msra.mxu0 %v103
    %418 = vmatmul.f32.gmra.mxu0 %v400
    %v419 = vpop.f32.mrf.mxu0
    %v420 = vadd.f32 0.0, %v419
    %421 = vdwg.mxu0
    %v423 = vrot.slane %v420, 6
    %v425 = vadd.f32 %v92, %v423
    %v426 = vxor.u32 %v425, 2147483648
    %v427 = vmul.f32 %v426, 1.442695
    %v428 = vpow.pop %v427
    %v429 = vadd.f32 %v428, 1.0
    %v430 = vrcp.pop %v429
    %v431 = vmul.f32 %v429, %v430
    %v432 = vsub.f32 1.0, %v431
    %v433 = vmul.f32 %v430, %v432
    %v434 = vadd.f32 %v430, %v433
    %vm435 = vweird.f32 %v429
    %vm436 = vweird.f32 %v430
    %vm437 = vmor %vm435, %vm436
    %v438 = vsel %vm437, %v430, %v434
    %v439 = vand.u32 2147483647, %v429
    %vm440 = vcmp.eq.f32.partialorder %v439, 8.507059e+37
    %v441 = vand.u32 %v429, 2147483648
    %v442 = vor.u32 1.1754944e-38, %v441
    %v443 = vsel %vm440, %v442, %v438
    %v444 = vmul.f32 1.0, %v443
    %v445 = vtanh.pop %v425
    %v448 = vrot.slane %v378, 2
    %v449 = vrot.slane %v379, 2
    %v450 = vsel %vm64, %v448, %v449
    %v452 = vmul.f32 %v444, %v450
    %454 = vrot.lane.b32.xlu0 %v445, 32
    %v455 = vpop.permute.xlu0 %454
    %v457 = vmul.f32 %v444, %v455
    %459 = vrot.lane.b32.xlu0 %v457, 32
    %v460 = vpop.permute.xlu0 %459
    %v462 = vadd.f32 %v452, %v460
    %v463 = vtanh.pop %v462
    %465 = vrot.lane.b32.xlu0 %v463, 32
    %v466 = vpop.permute.xlu0 %465
    %v468 = vmul.f32 %v444, %v466
    %v470 = vrot.slane %v468, 2
    %471 = vrot.lane.b32.xlu0 %v470, 64
    %v472 = vpop.permute.xlu0 %471
    %v473 = vsel %vm107, %v472, 0
    %475 = vmatpush.msra.mxu0 0.0
    %476 = vmatpush.msra.mxu0 0.0
    %477 = vmatpush.msra.mxu0 0.0
    %478 = vmatpush.msra.mxu0 0.0
    %479 = vmatpush.msra.mxu0 0.0
    %480 = vmatpush.msra.mxu0 0.0
    %481 = vmatpush.msra.mxu0 0.0
    %482 = vmatpush.msra.mxu0 0.0
    %483 = vmatpush.msra.mxu0 0.0
    %484 = vmatpush.msra.mxu0 0.0
    %485 = vmatpush.msra.mxu0 0.0
    %486 = vmatpush.msra.mxu0 0.0
    %487 = vmatpush.msra.mxu0 %v106
    %488 = vmatpush.msra.mxu0 %v105
    %489 = vmatpush.msra.mxu0 %v104
    %490 = vmatpush.msra.mxu0 %v103
    %491 = vmatmul.f32.gmra.mxu0 %v473
    %v492 = vpop.f32.mrf.mxu0
    %v493 = vadd.f32 0.0, %v492
    %494 = vdwg.mxu0
    %v495 = vadd.f32 %v95, %v493
    %v496 = vxor.u32 %v495, 2147483648
    %v497 = vmul.f32 %v496, 1.442695
    %v498 = vpow.pop %v497
    %v499 = vadd.f32 %v498, 1.0
    %v500 = vrcp.pop %v499
    %v501 = vmul.f32 %v499, %v500
    %v502 = vsub.f32 1.0, %v501
    %v503 = vmul.f32 %v500, %v502
    %v504 = vadd.f32 %v500, %v503
    %vm505 = vweird.f32 %v499
    %vm506 = vweird.f32 %v500
    %vm507 = vmor %vm505, %vm506
    %v508 = vsel %vm507, %v500, %v504
    %v509 = vand.u32 2147483647, %v499
    %vm510 = vcmp.eq.f32.partialorder %v509, 8.507059e+37
    %v511 = vand.u32 %v499, 2147483648
    %v512 = vor.u32 1.1754944e-38, %v511
    %v513 = vsel %vm510, %v512, %v508
    %v514 = vmul.f32 1.0, %v513
    %v515 = vtanh.pop %v495
    %v517 = vrot.slane %v462, 2
    %v519 = vmul.f32 %v514, %v517
    %521 = vrot.lane.b32.xlu0 %v515, 32
    %v522 = vpop.permute.xlu0 %521
    %v524 = vmul.f32 %v514, %v522
    %526 = vrot.lane.b32.xlu0 %v524, 32
    %v527 = vpop.permute.xlu0 %526
    %v529 = vadd.f32 %v519, %v527
    %v530 = vtanh.pop %v529
    %532 = vrot.lane.b32.xlu0 %v530, 32
    %v533 = vpop.permute.xlu0 %532
    %v535 = vmul.f32 %v514, %v533
    %537 = vrot.lane.b32.xlu0 %v535, 64
    %v538 = vpop.permute.xlu0 %537
    %v539 = vsel %vm107, %v538, 0
    %541 = vmatpush.msra.mxu0 0.0
    %542 = vmatpush.msra.mxu0 0.0
    %543 = vmatpush.msra.mxu0 0.0
    %544 = vmatpush.msra.mxu0 0.0
    %545 = vmatpush.msra.mxu0 0.0
    %546 = vmatpush.msra.mxu0 0.0
    %547 = vmatpush.msra.mxu0 0.0
    %548 = vmatpush.msra.mxu0 0.0
    %549 = vmatpush.msra.mxu0 0.0
    %550 = vmatpush.msra.mxu0 0.0
    %551 = vmatpush.msra.mxu0 0.0
    %552 = vmatpush.msra.mxu0 0.0
    %553 = vmatpush.msra.mxu0 %v106
    %554 = vmatpush.msra.mxu0 %v105
    %555 = vmatpush.msra.mxu0 %v104
    %556 = vmatpush.msra.mxu0 %v103
    %557 = vmatmul.f32.gmra.mxu0 %v539
    %v558 = vpop.f32.mrf.mxu0
    %v559 = vadd.f32 0.0, %v558
    %560 = vdwg.mxu0
    %v562 = vrot.slane %v559, 2
    %v564 = vadd.f32 %v95, %v562
    %v565 = vadd.f32 %v98, %v562
    %v566 = vxor.u32 %v564, 2147483648
    %v567 = vxor.u32 %v565, 2147483648
    %v568 = vmul.f32 %v566, 1.442695
    %v569 = vpow.pop %v568
    %v570 = vmul.f32 %v567, 1.442695
    %v571 = vpow.pop %v570
    %v572 = vadd.f32 %v569, 1.0
    %v573 = vadd.f32 %v571, 1.0
    %v574 = vrcp.pop %v572
    %v575 = vmul.f32 %v572, %v574
    %v576 = vsub.f32 1.0, %v575
    %v577 = vmul.f32 %v574, %v576
    %v578 = vadd.f32 %v574, %v577
    %vm579 = vweird.f32 %v572
    %vm580 = vweird.f32 %v574
    %vm581 = vmor %vm579, %vm580
    %v582 = vsel %vm581, %v574, %v578
    %v583 = vand.u32 2147483647, %v572
    %vm584 = vcmp.eq.f32.partialorder %v583, 8.507059e+37
    %v585 = vand.u32 %v572, 2147483648
    %v586 = vor.u32 1.1754944e-38, %v585
    %v587 = vsel %vm584, %v586, %v582
    %v588 = vmul.f32 1.0, %v587
    %v589 = vrcp.pop %v573
    %v590 = vmul.f32 %v573, %v589
    %v591 = vsub.f32 1.0, %v590
    %v592 = vmul.f32 %v589, %v591
    %v593 = vadd.f32 %v589, %v592
    %vm594 = vweird.f32 %v573
    %vm595 = vweird.f32 %v589
    %vm596 = vmor %vm594, %vm595
    %v597 = vsel %vm596, %v589, %v593
    %v598 = vand.u32 2147483647, %v573
    %vm599 = vcmp.eq.f32.partialorder %v598, 8.507059e+37
    %v600 = vand.u32 %v573, 2147483648
    %v601 = vor.u32 1.1754944e-38, %v600
    %v602 = vsel %vm599, %v601, %v597
    %v603 = vmul.f32 1.0, %v602
    %v604 = vtanh.pop %v564
    %v605 = vtanh.pop %v565
    %v607 = vrot.slane %v529, 2
    %v609 = vmul.f32 %v588, %v607
    %v610 = vmul.f32 %v603, %v607
    %613 = vrot.lane.b32.xlu0 %v604, 32
    %v614 = vpop.permute.xlu0 %613
    %615 = vrot.lane.b32.xlu0 %v605, 32
    %v616 = vpop.permute.xlu0 %615
    %v619 = vmul.f32 %v588, %v614
    %v620 = vmul.f32 %v603, %v616
    %623 = vrot.lane.b32.xlu0 %v619, 32
    %v624 = vpop.permute.xlu0 %623
    %625 = vrot.lane.b32.xlu0 %v620, 32
    %v626 = vpop.permute.xlu0 %625
    %v629 = vadd.f32 %v609, %v624
    %v630 = vadd.f32 %v610, %v626
    %v631 = vtanh.pop %v629
    %v632 = vtanh.pop %v630
    %635 = vrot.lane.b32.xlu0 %v631, 32
    %v636 = vpop.permute.xlu0 %635
    %637 = vrot.lane.b32.xlu0 %v632, 32
    %v638 = vpop.permute.xlu0 %637
    %v641 = vmul.f32 %v588, %v636
    %v642 = vmul.f32 %v603, %v638
    %v645 = vrot.slane %v641, 6
    %v646 = vrot.slane %v642, 6
    %v647 = vsel %vm278, %v645, %v646
    %648 = vrot.lane.b32.xlu0 %v647, 64
    %v649 = vpop.permute.xlu0 %648
    %v650 = vsel %vm107, %v649, 0
    %652 = vmatpush.msra.mxu0 0.0
    %653 = vmatpush.msra.mxu0 0.0
    %654 = vmatpush.msra.mxu0 0.0
    %655 = vmatpush.msra.mxu0 0.0
    %656 = vmatpush.msra.mxu0 0.0
    %657 = vmatpush.msra.mxu0 0.0
    %658 = vmatpush.msra.mxu0 0.0
    %659 = vmatpush.msra.mxu0 0.0
    %660 = vmatpush.msra.mxu0 0.0
    %661 = vmatpush.msra.mxu0 0.0
    %662 = vmatpush.msra.mxu0 0.0
    %663 = vmatpush.msra.mxu0 0.0
    %664 = vmatpush.msra.mxu0 %v106
    %665 = vmatpush.msra.mxu0 %v105
    %666 = vmatpush.msra.mxu0 %v104
    %667 = vmatpush.msra.mxu0 %v103
    %668 = vmatmul.f32.gmra.mxu0 %v650
    %v669 = vpop.f32.mrf.mxu0
    %v670 = vadd.f32 0.0, %v669
    %671 = vdwg.mxu0
    %v673 = vrot.slane %v670, 4
    %v675 = vadd.f32 %v98, %v673
    %v676 = vadd.f32 %v101, %v673
    %v677 = vxor.u32 %v675, 2147483648
    %v678 = vxor.u32 %v676, 2147483648
    %v679 = vmul.f32 %v677, 1.442695
    %v680 = vpow.pop %v679
    %v681 = vmul.f32 %v678, 1.442695
    %v682 = vpow.pop %v681
    %v683 = vadd.f32 %v680, 1.0
    %v684 = vadd.f32 %v682, 1.0
    %v685 = vrcp.pop %v683
    %v686 = vmul.f32 %v683, %v685
    %v687 = vsub.f32 1.0, %v686
    %v688 = vmul.f32 %v685, %v687
    %v689 = vadd.f32 %v685, %v688
    %vm690 = vweird.f32 %v683
    %vm691 = vweird.f32 %v685
    %vm692 = vmor %vm690, %vm691
    %v693 = vsel %vm692, %v685, %v689
    %v694 = vand.u32 2147483647, %v683
    %vm695 = vcmp.eq.f32.partialorder %v694, 8.507059e+37
    %v696 = vand.u32 %v683, 2147483648
    %v697 = vor.u32 1.1754944e-38, %v696
    %v698 = vsel %vm695, %v697, %v693
    %v699 = vmul.f32 1.0, %v698
    %v700 = vrcp.pop %v684
    %v701 = vmul.f32 %v684, %v700
    %v702 = vsub.f32 1.0, %v701
    %v703 = vmul.f32 %v700, %v702
    %v704 = vadd.f32 %v700, %v703
    %vm705 = vweird.f32 %v684
    %vm706 = vweird.f32 %v700
    %vm707 = vmor %vm705, %vm706
    %v708 = vsel %vm707, %v700, %v704
    %v709 = vand.u32 2147483647, %v684
    %vm710 = vcmp.eq.f32.partialorder %v709, 8.507059e+37
    %v711 = vand.u32 %v684, 2147483648
    %v712 = vor.u32 1.1754944e-38, %v711
    %v713 = vsel %vm710, %v712, %v708
    %v714 = vmul.f32 1.0, %v713
    %v715 = vtanh.pop %v675
    %v716 = vtanh.pop %v676
    %v719 = vrot.slane %v629, 2
    %v720 = vrot.slane %v630, 2
    %v721 = vsel %vm64, %v719, %v720
    %v724 = vmul.f32 %v699, %v721
    %v725 = vmul.f32 %v714, %v720
    %728 = vrot.lane.b32.xlu0 %v715, 32
    %v729 = vpop.permute.xlu0 %728
    %730 = vrot.lane.b32.xlu0 %v716, 32
    %v731 = vpop.permute.xlu0 %730
    %v734 = vmul.f32 %v699, %v729
    %v735 = vmul.f32 %v714, %v731
    %738 = vrot.lane.b32.xlu0 %v734, 32
    %v739 = vpop.permute.xlu0 %738
    %740 = vrot.lane.b32.xlu0 %v735, 32
    %v741 = vpop.permute.xlu0 %740
    %v744 = vadd.f32 %v724, %v739
    %v745 = vadd.f32 %v725, %v741
    %v746 = vtanh.pop %v744
    %v747 = vtanh.pop %v745
    %750 = vrot.lane.b32.xlu0 %v746, 32
    %v751 = vpop.permute.xlu0 %750
    %752 = vrot.lane.b32.xlu0 %v747, 32
    %v753 = vpop.permute.xlu0 %752
    %v756 = vmul.f32 %v699, %v751
    %v757 = vmul.f32 %v714, %v753
    %v760 = vrot.slane %v756, 4
    %v761 = vrot.slane %v757, 4
    %v762 = vsel %vm394, %v760, %v761
    %763 = vrot.lane.b32.xlu0 %v762, 64
    %v764 = vpop.permute.xlu0 %763
    %v765 = vsel %vm107, %v764, 0
    %767 = vmatpush.msra.mxu0 0.0
    %768 = vmatpush.msra.mxu0 0.0
    %769 = vmatpush.msra.mxu0 0.0
    %770 = vmatpush.msra.mxu0 0.0
    %771 = vmatpush.msra.mxu0 0.0
    %772 = vmatpush.msra.mxu0 0.0
    %773 = vmatpush.msra.mxu0 0.0
    %774 = vmatpush.msra.mxu0 0.0
    %775 = vmatpush.msra.mxu0 0.0
    %776 = vmatpush.msra.mxu0 0.0
    %777 = vmatpush.msra.mxu0 0.0
    %778 = vmatpush.msra.mxu0 0.0
    %779 = vmatpush.msra.mxu0 %v106
    %780 = vmatpush.msra.mxu0 %v105
    %781 = vmatpush.msra.mxu0 %v104
    %782 = vmatpush.msra.mxu0 %v103
    %783 = vmatmul.f32.gmra.mxu0 %v765
    %v784 = vpop.f32.mrf.mxu0
    %v785 = vadd.f32 0.0, %v784
    %786 = vdwg.mxu0
    %v788 = vrot.slane %v785, 6
    %v790 = vadd.f32 %v101, %v788
    %v791 = vxor.u32 %v790, 2147483648
    %v792 = vmul.f32 %v791, 1.442695
    %v793 = vpow.pop %v792
    %v794 = vadd.f32 %v793, 1.0
    %v795 = vrcp.pop %v794
    %v796 = vmul.f32 %v794, %v795
    %v797 = vsub.f32 1.0, %v796
    %v798 = vmul.f32 %v795, %v797
    %v799 = vadd.f32 %v795, %v798
    %vm800 = vweird.f32 %v794
    %vm801 = vweird.f32 %v795
    %vm802 = vmor %vm800, %vm801
    %v803 = vsel %vm802, %v795, %v799
    %v804 = vand.u32 2147483647, %v794
    %vm805 = vcmp.eq.f32.partialorder %v804, 8.507059e+37
    %v806 = vand.u32 %v794, 2147483648
    %v807 = vor.u32 1.1754944e-38, %v806
    %v808 = vsel %vm805, %v807, %v803
    %v809 = vmul.f32 1.0, %v808
    %v810 = vtanh.pop %v790
    %v813 = vrot.slane %v744, 2
    %v814 = vrot.slane %v745, 2
    %v815 = vsel %vm64, %v813, %v814
    %v817 = vmul.f32 %v809, %v815
    %819 = vrot.lane.b32.xlu0 %v810, 32
    %v820 = vpop.permute.xlu0 %819
    %v822 = vmul.f32 %v809, %v820
    %824 = vrot.lane.b32.xlu0 %v822, 32
    %v825 = vpop.permute.xlu0 %824
    %v827 = vadd.f32 %v817, %v825
    %v828 = vtanh.pop %v827
    %830 = vrot.lane.b32.xlu0 %v828, 32
    %v831 = vpop.permute.xlu0 %830
    %v833 = vmul.f32 %v809, %v831
    %v834 = vld [vmem:[%s4 + $0x1] sm:$0x1]
    %v835 = vld [vmem:[%s4 + $0x2] sm:$0x1]
    %837 = vrot.lane.b32.xlu0 %v833, 64
    %v838 = vpop.permute.xlu0 %837
    %vm840 = vcmask 261122
    %v841 = vsel %vm840, %v838, 0.0
    %842 = vadd.xlane.f32.xlu0 %v841
    %v843 = vpop.xlane.xlu0 %842
    %v844 = vrcp.pop 32.0
    %v845 = vmul.f32 32.0, %v844
    %v846 = vsub.f32 1.0, %v845
    %v847 = vmul.f32 %v844, %v846
    %v848 = vadd.f32 %v844, %v847
    %vm849 = vweird.f32 %v844
    %v850 = vsel %vm849, %v844, %v848
    %v851 = vmul.f32 %v843, %v850
    %v852 = vsub.f32 %v833, %v851
    %v853 = vmul.f32 %v852, %v852
    %855 = vrot.lane.b32.xlu0 %v853, 64
    %v856 = vpop.permute.xlu0 %855
    %v858 = vsel %vm840, %v856, 0.0
    %859 = vadd.xlane.f32.xlu0 %v858
    %v860 = vpop.xlane.xlu0 %859
    %v861 = vmul.f32 %v860, %v850
    %v862 = vadd.f32 %v861, 1e-05
    %v863 = vrsqrt.pop %v862
    %v864 = vmul.f32 %v863, %v862
    %v865 = vmul.f32 %v864, %v863
    %v866 = vmul.f32 0.5, %v865
    %v867 = vsub.f32 1.5, %v866
    %v868 = vmul.f32 %v863, %v867
    %vm869 = vweird.f32 %v862
    %vm870 = vweird.f32 %v863
    %vm871 = vmor %vm869, %vm870
    %v872 = vsel %vm871, %v863, %v868
    %v873 = vmul.f32 %v852, %v872
    %v874 = vperm.slane %v834, 0
    %876 = vrot.lane.b32.xlu0 %v874, 64
    %v877 = vpop.permute.xlu0 %876
    %v879 = vmul.f32 %v873, %v877
    %v880 = vperm.slane %v835, 0
    %882 = vrot.lane.b32.xlu0 %v880, 64
    %v883 = vpop.permute.xlu0 %882
    %v885 = vadd.f32 %v879, %v883
    %v886 = vld [vmem:[#allocation3 + $0x28] sm:$0xff]
    %v887 = vld [vmem:[#allocation3 + $0x30] sm:$0xff]
    %v888 = vld [vmem:[#allocation3 + $0x38] sm:$0xff]
    %v889 = vld [vmem:[#allocation3 + $0x40] sm:$0xff]
    %v891 = vrot.slane %v885, 2
    %892 = vrot.lane.b32.xlu0 %v891, 64
    %v893 = vpop.permute.xlu0 %892
    %v894 = vsel %vm107, %v893, 0
    %896 = vmatpush.msra.mxu0 0.0
    %897 = vmatpush.msra.mxu0 0.0
    %898 = vmatpush.msra.mxu0 0.0
    %899 = vmatpush.msra.mxu0 0.0
    %900 = vmatpush.msra.mxu0 0.0
    %901 = vmatpush.msra.mxu0 0.0
    %902 = vmatpush.msra.mxu0 0.0
    %903 = vmatpush.msra.mxu0 0.0
    %904 = vmatpush.msra.mxu0 0.0
    %905 = vmatpush.msra.mxu0 0.0
    %906 = vmatpush.msra.mxu0 0.0
    %907 = vmatpush.msra.mxu0 0.0
    %908 = vmatpush.msra.mxu0 %v889
    %909 = vmatpush.msra.mxu0 %v888
    %910 = vmatpush.msra.mxu0 %v887
    %911 = vmatpush.msra.mxu0 %v886
    %912 = vmatmul.f32.gmra.mxu0 %v894
    %v913 = vpop.f32.mrf.mxu0
    %v914 = vadd.f32 0.0, %v913
    %915 = vdwg.mxu0
    %v916 = vld [vmem:[%s1] sm:$0x3f]
    %v917 = vld [vmem:[%s2] sm:$0x1]
    %919 = vset.pattern.permute.xlu0 0
    %920 = vperm.xlu0 %919, %v916
    %v921 = vpop.permute.xlu0 %920
    %v924 = vperm.slane %v917, 0
    %vm926 = vcmp.eq.f32.partialorder %v921, %v924
    %v927 = vsel %vm926, 0.0, -1e+09
    %929 = vrot.lane.b32.xlu0 %v914, 96
    %v930 = vpop.permute.xlu0 %929
    %vm931 = vcmask 64512
    %v932 = vsel %vm931, %v914, 0
    %v934 = vsel %vm931, %v930, 0
    %936 = vmatpush.xpose.msra.mxu0 0.0
    %937 = vmatpush.xpose.msra.mxu0 0.0
    %938 = vmatpush.xpose.msra.mxu0 0.0
    %939 = vmatpush.xpose.msra.mxu0 0.0
    %940 = vmatpush.xpose.msra.mxu0 0.0
    %941 = vmatpush.xpose.msra.mxu0 0.0
    %942 = vmatpush.xpose.msra.mxu0 0.0
    %943 = vmatpush.xpose.msra.mxu0 0.0
    %944 = vmatpush.xpose.msra.mxu0 0.0
    %945 = vmatpush.xpose.msra.mxu0 0.0
    %946 = vmatpush.xpose.msra.mxu0 0.0
    %947 = vmatpush.xpose.msra.mxu0 0.0
    %948 = vmatpush.xpose.msra.mxu0 0.0
    %949 = vmatpush.xpose.msra.mxu0 0.0
    %950 = vmatpush.xpose.msra.mxu0 0.0
    %951 = vmatpush.xpose.msra.mxu0 %v934
    %952 = vmatmul.f32.gmra.mxu0 %v932
    %v953 = vpop.f32.mrf.mxu0
    %v954 = vadd.f32 0.0, %v953
    %955 = vdwg.mxu0
    %v956 = vmul.f32 %v954, 0.35355338
    %v957 = vadd.f32 %v956, %v927
    %vm958 = vcmask 46080
    %v959 = vsel %vm958, %v957, -inf
    %960 = vmax.xlane.f32.xlu0 %v959
    %v961 = vpop.xlane.xlu0 %960
    %v962 = vsub.f32 %v957, %v961
    %v963 = vmul.f32 %v962, 1.442695
    %v964 = vpow.pop %v963
    %v965 = vsel %vm958, %v964, 0.0
    %966 = vadd.xlane.f32.xlu0 %v965
    %v967 = vpop.xlane.xlu0 %966
    %v968 = vrcp.pop %v967
    %v969 = vmul.f32 %v967, %v968
    %v970 = vsub.f32 1.0, %v969
    %v971 = vmul.f32 %v968, %v970
    %v972 = vadd.f32 %v968, %v971
    %vm973 = vweird.f32 %v967
    %vm974 = vweird.f32 %v968
    %vm975 = vmor %vm973, %vm974
    %v976 = vsel %vm975, %v968, %v972
    %v977 = vand.u32 2147483647, %v967
    %vm978 = vcmp.eq.f32.partialorder %v977, 8.507059e+37
    %v979 = vand.u32 %v967, 2147483648
    %v980 = vor.u32 1.1754944e-38, %v979
    %v981 = vsel %vm978, %v980, %v976
    %v982 = vmul.f32 %v964, %v981
    %983 = vrot.lane.b32.xlu0 %v914, 64
    %v984 = vpop.permute.xlu0 %983
    %v986 = vsel %vm45, %v982, 0
    %v988 = vsel %vm64, %v984, 0
    %990 = vmatpush.msra.mxu0 0.0
    %991 = vmatpush.msra.mxu0 0.0
    %992 = vmatpush.msra.mxu0 0.0
    %993 = vmatpush.msra.mxu0 0.0
    %994 = vmatpush.msra.mxu0 0.0
    %995 = vmatpush.msra.mxu0 0.0
    %996 = vmatpush.msra.mxu0 0.0
    %997 = vmatpush.msra.mxu0 0.0
    %998 = vmatpush.msra.mxu0 0.0
    %999 = vmatpush.msra.mxu0 0.0
    %1000 = vmatpush.msra.mxu0 0.0
    %1001 = vmatpush.msra.mxu0 0.0
    %1002 = vmatpush.msra.mxu0 0.0
    %1003 = vmatpush.msra.mxu0 0.0
    %1004 = vmatpush.msra.mxu0 0.0
    %1005 = vmatpush.msra.mxu0 %v988
    %1006 = vmatmul.f32.gmra.mxu0 %v986
    %v1007 = vpop.f32.mrf.mxu0
    %v1008 = vadd.f32 0.0, %v1007
    %1009 = vdwg.mxu0
    %1010 = vrot.lane.b32.xlu0 %v914, 120
    %v1011 = vpop.permute.xlu0 %1010
    %1012 = vrot.lane.b32.xlu0 %v914, 88
    %v1013 = vpop.permute.xlu0 %1012
    %v1014 = vsel %vm931, %v1011, 0
    %v1016 = vsel %vm931, %v1013, 0
    %1018 = vmatpush.xpose.msra.mxu0 0.0
    %1019 = vmatpush.xpose.msra.mxu0 0.0
    %1020 = vmatpush.xpose.msra.mxu0 0.0
    %1021 = vmatpush.xpose.msra.mxu0 0.0
    %1022 = vmatpush.xpose.msra.mxu0 0.0
    %1023 = vmatpush.xpose.msra.mxu0 0.0
    %1024 = vmatpush.xpose.msra.mxu0 0.0
    %1025 = vmatpush.xpose.msra.mxu0 0.0
    %1026 = vmatpush.xpose.msra.mxu0 0.0
    %1027 = vmatpush.xpose.msra.mxu0 0.0
    %1028 = vmatpush.xpose.msra.mxu0 0.0
    %1029 = vmatpush.xpose.msra.mxu0 0.0
    %1030 = vmatpush.xpose.msra.mxu0 0.0
    %1031 = vmatpush.xpose.msra.mxu0 0.0
    %1032 = vmatpush.xpose.msra.mxu0 0.0
    %1033 = vmatpush.xpose.msra.mxu0 %v1016
    %1034 = vmatmul.f32.gmra.mxu0 %v1014
    %v1035 = vpop.f32.mrf.mxu0
    %v1036 = vadd.f32 0.0, %v1035
    %1037 = vdwg.mxu0
    %v1038 = vmul.f32 %v1036, 0.35355338
    %v1039 = vadd.f32 %v1038, %v927
    %v1040 = vsel %vm958, %v1039, -inf
    %1041 = vmax.xlane.f32.xlu0 %v1040
    %v1042 = vpop.xlane.xlu0 %1041
    %v1043 = vsub.f32 %v1039, %v1042
    %v1044 = vmul.f32 %v1043, 1.442695
    %v1045 = vpow.pop %v1044
    %v1046 = vsel %vm958, %v1045, 0.0
    %1047 = vadd.xlane.f32.xlu0 %v1046
    %v1048 = vpop.xlane.xlu0 %1047
    %v1049 = vrcp.pop %v1048
    %v1050 = vmul.f32 %v1048, %v1049
    %v1051 = vsub.f32 1.0, %v1050
    %v1052 = vmul.f32 %v1049, %v1051
    %v1053 = vadd.f32 %v1049, %v1052
    %vm1054 = vweird.f32 %v1048
    %vm1055 = vweird.f32 %v1049
    %vm1056 = vmor %vm1054, %vm1055
    %v1057 = vsel %vm1056, %v1049, %v1053
    %v1058 = vand.u32 2147483647, %v1048
    %vm1059 = vcmp.eq.f32.partialorder %v1058, 8.507059e+37
    %v1060 = vand.u32 %v1048, 2147483648
    %v1061 = vor.u32 1.1754944e-38, %v1060
    %v1062 = vsel %vm1059, %v1061, %v1057
    %v1063 = vmul.f32 %v1045, %v1062
    %1064 = vrot.lane.b32.xlu0 %v914, 56
    %v1065 = vpop.permute.xlu0 %1064
    %v1067 = vsel %vm45, %v1063, 0
    %v1069 = vsel %vm64, %v1065, 0
    %1071 = vmatpush.msra.mxu0 0.0
    %1072 = vmatpush.msra.mxu0 0.0
    %1073 = vmatpush.msra.mxu0 0.0
    %1074 = vmatpush.msra.mxu0 0.0
    %1075 = vmatpush.msra.mxu0 0.0
    %1076 = vmatpush.msra.mxu0 0.0
    %1077 = vmatpush.msra.mxu0 0.0
    %1078 = vmatpush.msra.mxu0 0.0
    %1079 = vmatpush.msra.mxu0 0.0
    %1080 = vmatpush.msra.mxu0 0.0
    %1081 = vmatpush.msra.mxu0 0.0
    %1082 = vmatpush.msra.mxu0 0.0
    %1083 = vmatpush.msra.mxu0 0.0
    %1084 = vmatpush.msra.mxu0 0.0
    %1085 = vmatpush.msra.mxu0 0.0
    %1086 = vmatpush.msra.mxu0 %v1069
    %1087 = vmatmul.f32.gmra.mxu0 %v1067
    %v1088 = vpop.f32.mrf.mxu0
    %v1089 = vadd.f32 0.0, %v1088
    %1090 = vdwg.mxu0
    %1091 = vrot.lane.b32.xlu0 %v914, 112
    %v1092 = vpop.permute.xlu0 %1091
    %1093 = vrot.lane.b32.xlu0 %v914, 80
    %v1094 = vpop.permute.xlu0 %1093
    %v1095 = vsel %vm931, %v1092, 0
    %v1097 = vsel %vm931, %v1094, 0
    %1099 = vmatpush.xpose.msra.mxu0 0.0
    %1100 = vmatpush.xpose.msra.mxu0 0.0
    %1101 = vmatpush.xpose.msra.mxu0 0.0
    %1102 = vmatpush.xpose.msra.mxu0 0.0
    %1103 = vmatpush.xpose.msra.mxu0 0.0
    %1104 = vmatpush.xpose.msra.mxu0 0.0
    %1105 = vmatpush.xpose.msra.mxu0 0.0
    %1106 = vmatpush.xpose.msra.mxu0 0.0
    %1107 = vmatpush.xpose.msra.mxu0 0.0
    %1108 = vmatpush.xpose.msra.mxu0 0.0
    %1109 = vmatpush.xpose.msra.mxu0 0.0
    %1110 = vmatpush.xpose.msra.mxu0 0.0
    %1111 = vmatpush.xpose.msra.mxu0 0.0
    %1112 = vmatpush.xpose.msra.mxu0 0.0
    %1113 = vmatpush.xpose.msra.mxu0 0.0
    %1114 = vmatpush.xpose.msra.mxu0 %v1097
    %1115 = vmatmul.f32.gmra.mxu0 %v1095
    %v1116 = vpop.f32.mrf.mxu0
    %v1117 = vadd.f32 0.0, %v1116
    %1118 = vdwg.mxu0
    %v1119 = vmul.f32 %v1117, 0.35355338
    %v1120 = vadd.f32 %v1119, %v927
    %v1121 = vsel %vm958, %v1120, -inf
    %1122 = vmax.xlane.f32.xlu0 %v1121
    %v1123 = vpop.xlane.xlu0 %1122
    %v1124 = vsub.f32 %v1120, %v1123
    %v1125 = vmul.f32 %v1124, 1.442695
    %v1126 = vpow.pop %v1125
    %v1127 = vsel %vm958, %v1126, 0.0
    %1128 = vadd.xlane.f32.xlu0 %v1127
    %v1129 = vpop.xlane.xlu0 %1128
    %v1130 = vrcp.pop %v1129
    %v1131 = vmul.f32 %v1129, %v1130
    %v1132 = vsub.f32 1.0, %v1131
    %v1133 = vmul.f32 %v1130, %v1132
    %v1134 = vadd.f32 %v1130, %v1133
    %vm1135 = vweird.f32 %v1129
    %vm1136 = vweird.f32 %v1130
    %vm1137 = vmor %vm1135, %vm1136
    %v1138 = vsel %vm1137, %v1130, %v1134
    %v1139 = vand.u32 2147483647, %v1129
    %vm1140 = vcmp.eq.f32.partialorder %v1139, 8.507059e+37
    %v1141 = vand.u32 %v1129, 2147483648
    %v1142 = vor.u32 1.1754944e-38, %v1141
    %v1143 = vsel %vm1140, %v1142, %v1138
    %v1144 = vmul.f32 %v1126, %v1143
    %1145 = vrot.lane.b32.xlu0 %v914, 48
    %v1146 = vpop.permute.xlu0 %1145
    %v1148 = vsel %vm45, %v1144, 0
    %v1150 = vsel %vm64, %v1146, 0
    %1152 = vmatpush.msra.mxu0 0.0
    %1153 = vmatpush.msra.mxu0 0.0
    %1154 = vmatpush.msra.mxu0 0.0
    %1155 = vmatpush.msra.mxu0 0.0
    %1156 = vmatpush.msra.mxu0 0.0
    %1157 = vmatpush.msra.mxu0 0.0
    %1158 = vmatpush.msra.mxu0 0.0
    %1159 = vmatpush.msra.mxu0 0.0
    %1160 = vmatpush.msra.mxu0 0.0
    %1161 = vmatpush.msra.mxu0 0.0
    %1162 = vmatpush.msra.mxu0 0.0
    %1163 = vmatpush.msra.mxu0 0.0
    %1164 = vmatpush.msra.mxu0 0.0
    %1165 = vmatpush.msra.mxu0 0.0
    %1166 = vmatpush.msra.mxu0 0.0
    %1167 = vmatpush.msra.mxu0 %v1150
    %1168 = vmatmul.f32.gmra.mxu0 %v1148
    %v1169 = vpop.f32.mrf.mxu0
    %v1170 = vadd.f32 0.0, %v1169
    %1171 = vdwg.mxu0
    %1172 = vrot.lane.b32.xlu0 %v914, 104
    %v1173 = vpop.permute.xlu0 %1172
    %1174 = vrot.lane.b32.xlu0 %v914, 72
    %v1175 = vpop.permute.xlu0 %1174
    %v1176 = vsel %vm931, %v1173, 0
    %v1178 = vsel %vm931, %v1175, 0
    %1180 = vmatpush.xpose.msra.mxu0 0.0
    %1181 = vmatpush.xpose.msra.mxu0 0.0
    %1182 = vmatpush.xpose.msra.mxu0 0.0
    %1183 = vmatpush.xpose.msra.mxu0 0.0
    %1184 = vmatpush.xpose.msra.mxu0 0.0
    %1185 = vmatpush.xpose.msra.mxu0 0.0
    %1186 = vmatpush.xpose.msra.mxu0 0.0
    %1187 = vmatpush.xpose.msra.mxu0 0.0
    %1188 = vmatpush.xpose.msra.mxu0 0.0
    %1189 = vmatpush.xpose.msra.mxu0 0.0
    %1190 = vmatpush.xpose.msra.mxu0 0.0
    %1191 = vmatpush.xpose.msra.mxu0 0.0
    %1192 = vmatpush.xpose.msra.mxu0 0.0
    %1193 = vmatpush.xpose.msra.mxu0 0.0
    %1194 = vmatpush.xpose.msra.mxu0 0.0
    %1195 = vmatpush.xpose.msra.mxu0 %v1178
    %1196 = vmatmul.f32.gmra.mxu0 %v1176
    %v1197 = vpop.f32.mrf.mxu0
    %v1198 = vadd.f32 0.0, %v1197
    %1199 = vdwg.mxu0
    %v1200 = vmul.f32 %v1198, 0.35355338
    %v1201 = vadd.f32 %v1200, %v927
    %v1202 = vsel %vm958, %v1201, -inf
    %1203 = vmax.xlane.f32.xlu0 %v1202
    %v1204 = vpop.xlane.xlu0 %1203
    %v1205 = vsub.f32 %v1201, %v1204
    %v1206 = vmul.f32 %v1205, 1.442695
    %v1207 = vpow.pop %v1206
    %v1208 = vsel %vm958, %v1207, 0.0
    %1209 = vadd.xlane.f32.xlu0 %v1208
    %v1210 = vpop.xlane.xlu0 %1209
    %v1211 = vrcp.pop %v1210
    %v1212 = vmul.f32 %v1210, %v1211
    %v1213 = vsub.f32 1.0, %v1212
    %v1214 = vmul.f32 %v1211, %v1213
    %v1215 = vadd.f32 %v1211, %v1214
    %vm1216 = vweird.f32 %v1210
    %vm1217 = vweird.f32 %v1211
    %vm1218 = vmor %vm1216, %vm1217
    %v1219 = vsel %vm1218, %v1211, %v1215
    %v1220 = vand.u32 2147483647, %v1210
    %vm1221 = vcmp.eq.f32.partialorder %v1220, 8.507059e+37
    %v1222 = vand.u32 %v1210, 2147483648
    %v1223 = vor.u32 1.1754944e-38, %v1222
    %v1224 = vsel %vm1221, %v1223, %v1219
    %v1225 = vmul.f32 %v1207, %v1224
    %1226 = vrot.lane.b32.xlu0 %v914, 40
    %v1227 = vpop.permute.xlu0 %1226
    %v1229 = vsel %vm45, %v1225, 0
    %v1231 = vsel %vm64, %v1227, 0
    %1233 = vmatpush.msra.mxu0 0.0
    %1234 = vmatpush.msra.mxu0 0.0
    %1235 = vmatpush.msra.mxu0 0.0
    %1236 = vmatpush.msra.mxu0 0.0
    %1237 = vmatpush.msra.mxu0 0.0
    %1238 = vmatpush.msra.mxu0 0.0
    %1239 = vmatpush.msra.mxu0 0.0
    %1240 = vmatpush.msra.mxu0 0.0
    %1241 = vmatpush.msra.mxu0 0.0
    %1242 = vmatpush.msra.mxu0 0.0
    %1243 = vmatpush.msra.mxu0 0.0
    %1244 = vmatpush.msra.mxu0 0.0
    %1245 = vmatpush.msra.mxu0 0.0
    %1246 = vmatpush.msra.mxu0 0.0
    %1247 = vmatpush.msra.mxu0 0.0
    %1248 = vmatpush.msra.mxu0 %v1231
    %1249 = vmatmul.f32.gmra.mxu0 %v1229
    %v1250 = vpop.f32.mrf.mxu0
    %v1251 = vadd.f32 0.0, %v1250
    %1252 = vdwg.mxu0
    %1254 = vrot.lane.b32.xlu0 %v1089, 8
    %v1255 = vpop.permute.xlu0 %1254
    %1258 = vrot.lane.b32.xlu0 %v1170, 16
    %v1259 = vpop.permute.xlu0 %1258
    %1262 = vrot.lane.b32.xlu0 %v1251, 24
    %v1263 = vpop.permute.xlu0 %1262
    %v1265 = vsel %vm931, %v1008, %v1255
    %vm1266 = vcmask 130048
    %v1267 = vsel %vm1266, %v1265, %v1259
    %vm1268 = vcmask 195584
    %v1269 = vsel %vm1268, %v1267, %v1263
    %v1270 = vld [vmem:[#allocation3 + $0x48] sm:$0xff]
    %v1271 = vld [vmem:[#allocation3 + $0x50] sm:$0xff]
    %v1272 = vld [vmem:[#allocation3 + $0x58] sm:$0xff]
    %v1273 = vld [vmem:[#allocation3 + $0x60] sm:$0xff]
    %v1275 = vsel %vm107, %v1269, 0
    %1277 = vmatpush.msra.mxu0 0.0
    %1278 = vmatpush.msra.mxu0 0.0
    %1279 = vmatpush.msra.mxu0 0.0
    %1280 = vmatpush.msra.mxu0 0.0
    %1281 = vmatpush.msra.mxu0 0.0
    %1282 = vmatpush.msra.mxu0 0.0
    %1283 = vmatpush.msra.mxu0 0.0
    %1284 = vmatpush.msra.mxu0 0.0
    %1285 = vmatpush.msra.mxu0 0.0
    %1286 = vmatpush.msra.mxu0 0.0
    %1287 = vmatpush.msra.mxu0 0.0
    %1288 = vmatpush.msra.mxu0 0.0
    %1289 = vmatpush.msra.mxu0 %v1273
    %1290 = vmatpush.msra.mxu0 %v1272
    %1291 = vmatpush.msra.mxu0 %v1271
    %1292 = vmatpush.msra.mxu0 %v1270
    %1293 = vmatmul.f32.gmra.mxu0 %v1275
    %v1294 = vpop.f32.mrf.mxu0
    %v1295 = vadd.f32 0.0, %v1294
    %1296 = vdwg.mxu0
    %1297 = vrot.lane.b32.xlu0 %v885, 64
    %v1298 = vpop.permute.xlu0 %1297
    %v1301 = vrot.slane %v1295, 6
    %1302 = vrot.lane.b32.xlu0 %v1301, 32
    %v1303 = vpop.permute.xlu0 %1302
    %v1305 = vsel %vm107, %v1298, %v1303
    %v1306 = vld [vmem:[%s4 + $0x3] sm:$0x1]
    %v1307 = vld [vmem:[%s4 + $0x4] sm:$0x1]
    %vm1308 = vcmask 523266
    %v1309 = vsel %vm1308, %v1305, 0.0
    %1310 = vadd.xlane.f32.xlu0 %v1309
    %v1311 = vpop.xlane.xlu0 %1310
    %v1312 = vrcp.pop 64.0
    %v1313 = vmul.f32 64.0, %v1312
    %v1314 = vsub.f32 1.0, %v1313
    %v1315 = vmul.f32 %v1312, %v1314
    %v1316 = vadd.f32 %v1312, %v1315
    %vm1317 = vweird.f32 %v1312
    %v1318 = vsel %vm1317, %v1312, %v1316
    %v1319 = vmul.f32 %v1311, %v1318
    %v1320 = vsub.f32 %v1305, %v1319
    %v1321 = vmul.f32 %v1320, %v1320
    %v1322 = vsel %vm1308, %v1321, 0.0
    %1323 = vadd.xlane.f32.xlu0 %v1322
    %v1324 = vpop.xlane.xlu0 %1323
    %v1325 = vmul.f32 %v1324, %v1318
    %v1326 = vadd.f32 %v1325, 1e-05
    %v1327 = vrsqrt.pop %v1326
    %v1328 = vmul.f32 %v1327, %v1326
    %v1329 = vmul.f32 %v1328, %v1327
    %v1330 = vmul.f32 0.5, %v1329
    %v1331 = vsub.f32 1.5, %v1330
    %v1332 = vmul.f32 %v1327, %v1331
    %vm1333 = vweird.f32 %v1326
    %vm1334 = vweird.f32 %v1327
    %vm1335 = vmor %vm1333, %vm1334
    %v1336 = vsel %vm1335, %v1327, %v1332
    %v1337 = vmul.f32 %v1320, %v1336
    %v1338 = vperm.slane %v1306, 0
    %v1339 = vmul.f32 %v1337, %v1338
    %v1340 = vperm.slane %v1307, 0
    %v1341 = vadd.f32 %v1339, %v1340
    %v1342 = vld [vmem:[#allocation3 + $0x68] sm:$0xff]
    %v1343 = vld [vmem:[#allocation3 + $0x70] sm:$0xff]
    %v1344 = vld [vmem:[#allocation3 + $0x78] sm:$0xff]
    %v1345 = vld [vmem:[#allocation3 + $0x80] sm:$0xff]
    %v1346 = vld [vmem:[#allocation3 + $0x88] sm:$0xff]
    %v1347 = vld [vmem:[#allocation3 + $0x90] sm:$0xff]
    %v1348 = vld [vmem:[#allocation3 + $0x98] sm:$0xff]
    %v1349 = vld [vmem:[#allocation3 + $0xa0] sm:$0xff]
    %v1350 = vld [vmem:[%s4 + $0x5] sm:$0x1]
    %v1351 = vperm.slane %v1350, 0
    %v1353 = vrot.slane %v1341, 2
    %vm1354 = vcmask 523264
    %v1355 = vsel %vm1354, %v1353, 0
    %1357 = vmatpush.msra.mxu0 0.0
    %1358 = vmatpush.msra.mxu0 0.0
    %1359 = vmatpush.msra.mxu0 0.0
    %1360 = vmatpush.msra.mxu0 0.0
    %1361 = vmatpush.msra.mxu0 0.0
    %1362 = vmatpush.msra.mxu0 0.0
    %1363 = vmatpush.msra.mxu0 0.0
    %1364 = vmatpush.msra.mxu0 0.0
    %1365 = vmatpush.msra.mxu0 %v1349
    %1366 = vmatpush.msra.mxu0 %v1348
    %1367 = vmatpush.msra.mxu0 %v1347
    %1368 = vmatpush.msra.mxu0 %v1346
    %1369 = vmatpush.msra.mxu0 %v1345
    %1370 = vmatpush.msra.mxu0 %v1344
    %1371 = vmatpush.msra.mxu0 %v1343
    %1372 = vmatpush.msra.mxu0 %v1342
    %1373 = vmatmul.f32.gmra.mxu0 %v1355
    %v1374 = vpop.f32.mrf.mxu0
    %v1375 = vadd.f32 %v1351, %v1374
    %1376 = vdwg.mxu0
    %v1377 = vtanh.pop %v1375
    %v1378 = vld [vmem:[#allocation3 + $0xa8] sm:$0xff]
    %v1379 = vld [vmem:[#allocation3 + $0xb0] sm:$0xff]
    %v1380 = vld [vmem:[#allocation3 + $0xb8] sm:$0xff]
    %v1381 = vld [vmem:[#allocation3 + $0xc0] sm:$0xff]
    %v1382 = vld [vmem:[#allocation3 + $0xc8] sm:$0xff]
    %v1383 = vld [vmem:[#allocation3 + $0xd0] sm:$0xff]
    %v1384 = vld [vmem:[#allocation3 + $0xd8] sm:$0xff]
    %v1385 = vld [vmem:[#allocation3 + $0xe0] sm:$0xff]
    %v1386 = vld [vmem:[%s4 + $0x6] sm:$0x1]
    %v1387 = vperm.slane %v1386, 0
    %v1389 = vsel %vm1354, %v1377, 0
    %1391 = vmatpush.msra.mxu0 0.0
    %1392 = vmatpush.msra.mxu0 0.0
    %1393 = vmatpush.msra.mxu0 0.0
    %1394 = vmatpush.msra.mxu0 0.0
    %1395 = vmatpush.msra.mxu0 0.0
    %1396 = vmatpush.msra.mxu0 0.0
    %1397 = vmatpush.msra.mxu0 0.0
    %1398 = vmatpush.msra.mxu0 0.0
    %1399 = vmatpush.msra.mxu0 %v1385
    %1400 = vmatpush.msra.mxu0 %v1384
    %1401 = vmatpush.msra.mxu0 %v1383
    %1402 = vmatpush.msra.mxu0 %v1382
    %1403 = vmatpush.msra.mxu0 %v1381
    %1404 = vmatpush.msra.mxu0 %v1380
    %1405 = vmatpush.msra.mxu0 %v1379
    %1406 = vmatpush.msra.mxu0 %v1378
    %1407 = vmatmul.f32.gmra.mxu0 %v1389
    %v1408 = vpop.f32.mrf.mxu0
    %v1409 = vadd.f32 %v1387, %v1408
    %1410 = vdwg.mxu0
    %v1411 = vtanh.pop %v1409
    %v1412 = vld [vmem:[%s0 + $0x2a] sm:$0x3f]
    %v1413 = vld [vmem:[#allocation3 + $0xe8] sm:$0x3]
    %v1414 = vld [vmem:[%s4 + $0x7] sm:$0x1]
    %v1415 = vperm.slane %v1414, 0
    %1417 = vrot.lane.b32.xlu0 %v1412, 126
    %v1418 = vpop.permute.xlu0 %1417
    %vm1419 = vcmask 15360
    %v1420 = vsel %vm1419, %v1418, 0
    %v1423 = vsel %vm278, %v1413, 0
    %1425 = vmatpush.msra.mxu0 0.0
    %1426 = vmatpush.msra.mxu0 0.0
    %1427 = vmatpush.msra.mxu0 0.0
    %1428 = vmatpush.msra.mxu0 0.0
    %1429 = vmatpush.msra.mxu0 0.0
    %1430 = vmatpush.msra.mxu0 0.0
    %1431 = vmatpush.msra.mxu0 0.0
    %1432 = vmatpush.msra.mxu0 0.0
    %1433 = vmatpush.msra.mxu0 0.0
    %1434 = vmatpush.msra.mxu0 0.0
    %1435 = vmatpush.msra.mxu0 0.0
    %1436 = vmatpush.msra.mxu0 0.0
    %1437 = vmatpush.msra.mxu0 0.0
    %1438 = vmatpush.msra.mxu0 0.0
    %1439 = vmatpush.msra.mxu0 0.0
    %1440 = vmatpush.msra.mxu0 %v1423
    %1441 = vmatmul.f32.gmra.mxu0 %v1420
    %v1442 = vpop.f32.mrf.mxu0
    %v1443 = vadd.f32 %v1415, %v1442
    %1444 = vdwg.mxu0
    %v1445 = vld [vmem:[#allocation3 + $0xf0] sm:$0xff]
    %v1446 = vld [vmem:[#allocation3 + $0xf8] sm:$0xff]
    %v1447 = vld [vmem:[#allocation3 + $0x100] sm:$0xff]
    %v1448 = vld [vmem:[#allocation3 + $0x108] sm:$0xff]
    %v1449 = vld [vmem:[#allocation3 + $0x110] sm:$0xff]
    %v1450 = vld [vmem:[#allocation3 + $0x118] sm:$0xff]
    %v1451 = vld [vmem:[#allocation3 + $0x120] sm:$0xff]
    %v1452 = vld [vmem:[#allocation3 + $0x128] sm:$0xff]
    %v1453 = vld [vmem:[%s4 + $0x8] sm:$0x1]
    %v1455 = vsel %vm107, %v1411, 0
    %1457 = vmatpush.msra.mxu0 0.0
    %1458 = vmatpush.msra.mxu0 0.0
    %1459 = vmatpush.msra.mxu0 0.0
    %1460 = vmatpush.msra.mxu0 0.0
    %1461 = vmatpush.msra.mxu0 0.0
    %1462 = vmatpush.msra.mxu0 0.0
    %1463 = vmatpush.msra.mxu0 0.0
    %1464 = vmatpush.msra.mxu0 0.0
    %1465 = vmatpush.msra.mxu0 0.0
    %1466 = vmatpush.msra.mxu0 0.0
    %1467 = vmatpush.msra.mxu0 0.0
    %1468 = vmatpush.msra.mxu0 0.0
    %1469 = vmatpush.msra.mxu0 %v1448
    %1470 = vmatpush.msra.mxu0 %v1447
    %1471 = vmatpush.msra.mxu0 %v1446
    %1472 = vmatpush.msra.mxu0 %v1445
    %1473 = vmatmul.f32.gmra.mxu0 %v1455
    %v1474 = vpop.f32.mrf.mxu0
    %v1475 = vadd.f32 0.0, %v1474
    %1476 = vdwg.mxu0
    %v1477 = vadd.f32 %v1443, %v1475
    %v1478 = vxor.u32 %v1477, 2147483648
    %v1479 = vmul.f32 %v1478, 1.442695
    %v1480 = vpow.pop %v1479
    %v1481 = vadd.f32 %v1480, 1.0
    %v1482 = vrcp.pop %v1481
    %v1483 = vmul.f32 %v1481, %v1482
    %v1484 = vsub.f32 1.0, %v1483
    %v1485 = vmul.f32 %v1482, %v1484
    %v1486 = vadd.f32 %v1482, %v1485
    %vm1487 = vweird.f32 %v1481
    %vm1488 = vweird.f32 %v1482
    %vm1489 = vmor %vm1487, %vm1488
    %v1490 = vsel %vm1489, %v1482, %v1486
    %v1491 = vand.u32 2147483647, %v1481
    %vm1492 = vcmp.eq.f32.partialorder %v1491, 8.507059e+37
    %v1493 = vand.u32 %v1481, 2147483648
    %v1494 = vor.u32 1.1754944e-38, %v1493
    %v1495 = vsel %vm1492, %v1494, %v1490
    %v1496 = vmul.f32 1.0, %v1495
    %v1497 = vtanh.pop %v1477
    %v1498 = vmul.f32 %v1496, 0.0
    %1500 = vrot.lane.b32.xlu0 %v1497, 32
    %v1501 = vpop.permute.xlu0 %1500
    %v1503 = vmul.f32 %v1496, %v1501
    %1505 = vrot.lane.b32.xlu0 %v1503, 32
    %v1506 = vpop.permute.xlu0 %1505
    %v1508 = vadd.f32 %v1498, %v1506
    %v1509 = vtanh.pop %v1508
    %1511 = vrot.lane.b32.xlu0 %v1509, 32
    %v1512 = vpop.permute.xlu0 %1511
    %v1514 = vmul.f32 %v1496, %v1512
    %1516 = vrot.lane.b32.xlu0 %v1514, 64
    %v1517 = vpop.permute.xlu0 %1516
    %vm1519 = vcmask 259072
    %1520 = vst.msk [vmem:[#allocation2] sm:$0x3f] %vm1519, %v1517
    %v1521 = vperm.slane %v1453, 0
    %v1522 = vsel %vm107, %v1517, 0
    %1524 = vmatpush.msra.mxu0 0.0
    %1525 = vmatpush.msra.mxu0 0.0
    %1526 = vmatpush.msra.mxu0 0.0
    %1527 = vmatpush.msra.mxu0 0.0
    %1528 = vmatpush.msra.mxu0 0.0
    %1529 = vmatpush.msra.mxu0 0.0
    %1530 = vmatpush.msra.mxu0 0.0
    %1531 = vmatpush.msra.mxu0 0.0
    %1532 = vmatpush.msra.mxu0 0.0
    %1533 = vmatpush.msra.mxu0 0.0
    %1534 = vmatpush.msra.mxu0 0.0
    %1535 = vmatpush.msra.mxu0 0.0
    %1536 = vmatpush.msra.mxu0 %v1452
    %1537 = vmatpush.msra.mxu0 %v1451
    %1538 = vmatpush.msra.mxu0 %v1450
    %1539 = vmatpush.msra.mxu0 %v1449
    %1540 = vmatmul.f32.gmra.mxu0 %v1522
    %v1541 = vpop.f32.mrf.mxu0
    %v1542 = vadd.f32 %v1521, %v1541
    %1543 = vdwg.mxu0
    %v1544 = vxor.u32 %v1542, 2147483648
    %v1545 = vmul.f32 %v1544, 1.442695
    %v1546 = vpow.pop %v1545
    %v1547 = vadd.f32 %v1546, 1.0
    %v1548 = vrcp.pop %v1547
    %v1549 = vmul.f32 %v1547, %v1548
    %v1550 = vsub.f32 1.0, %v1549
    %v1551 = vmul.f32 %v1548, %v1550
    %v1552 = vadd.f32 %v1548, %v1551
    %vm1553 = vweird.f32 %v1547
    %vm1554 = vweird.f32 %v1548
    %vm1555 = vmor %vm1553, %vm1554
    %v1556 = vsel %vm1555, %v1548, %v1552
    %v1557 = vand.u32 2147483647, %v1547
    %vm1558 = vcmp.eq.f32.partialorder %v1557, 8.507059e+37
    %v1559 = vand.u32 %v1547, 2147483648
    %v1560 = vor.u32 1.1754944e-38, %v1559
    %v1561 = vsel %vm1558, %v1560, %v1556
    %v1562 = vmul.f32 1.0, %v1561
    %v1563 = vtanh.pop %v1542
    %v1564 = vmul.f32 %v1562, %v1508
    %1566 = vrot.lane.b32.xlu0 %v1563, 32
    %v1567 = vpop.permute.xlu0 %1566
    %v1569 = vmul.f32 %v1562, %v1567
    %1571 = vrot.lane.b32.xlu0 %v1569, 32
    %v1572 = vpop.permute.xlu0 %1571
    %v1574 = vadd.f32 %v1564, %v1572
    %v1575 = vtanh.pop %v1574
    %1577 = vrot.lane.b32.xlu0 %v1575, 32
    %v1578 = vpop.permute.xlu0 %1577
    %v1580 = vmul.f32 %v1562, %v1578
    %1582 = vrot.lane.b32.xlu0 %v1580, 96
    %v1583 = vpop.permute.xlu0 %1582
    %vm1585 = vcmask 521472
    %1586 = vst.msk [vmem:[#allocation2] sm:$0x3f] %vm1585, %v1583
    %1587 = vrot.lane.b32.xlu0 %v1580, 64
    %v1588 = vpop.permute.xlu0 %1587
    %v1589 = vsel %vm107, %v1588, 0
    %1591 = vmatpush.msra.mxu0 0.0
    %1592 = vmatpush.msra.mxu0 0.0
    %1593 = vmatpush.msra.mxu0 0.0
    %1594 = vmatpush.msra.mxu0 0.0
    %1595 = vmatpush.msra.mxu0 0.0
    %1596 = vmatpush.msra.mxu0 0.0
    %1597 = vmatpush.msra.mxu0 0.0
    %1598 = vmatpush.msra.mxu0 0.0
    %1599 = vmatpush.msra.mxu0 0.0
    %1600 = vmatpush.msra.mxu0 0.0
    %1601 = vmatpush.msra.mxu0 0.0
    %1602 = vmatpush.msra.mxu0 0.0
    %1603 = vmatpush.msra.mxu0 %v1452
    %1604 = vmatpush.msra.mxu0 %v1451
    %1605 = vmatpush.msra.mxu0 %v1450
    %1606 = vmatpush.msra.mxu0 %v1449
    %1607 = vmatmul.f32.gmra.mxu0 %v1589
    %v1608 = vpop.f32.mrf.mxu0
    %v1609 = vadd.f32 %v1521, %v1608
    %1610 = vdwg.mxu0
    %v1611 = vxor.u32 %v1609, 2147483648
    %v1612 = vmul.f32 %v1611, 1.442695
    %v1613 = vpow.pop %v1612
    %v1614 = vadd.f32 %v1613, 1.0
    %v1615 = vrcp.pop %v1614
    %v1616 = vmul.f32 %v1614, %v1615
    %v1617 = vsub.f32 1.0, %v1616
    %v1618 = vmul.f32 %v1615, %v1617
    %v1619 = vadd.f32 %v1615, %v1618
    %vm1620 = vweird.f32 %v1614
    %vm1621 = vweird.f32 %v1615
    %vm1622 = vmor %vm1620, %vm1621
    %v1623 = vsel %vm1622, %v1615, %v1619
    %v1624 = vand.u32 2147483647, %v1614
    %vm1625 = vcmp.eq.f32.partialorder %v1624, 8.507059e+37
    %v1626 = vand.u32 %v1614, 2147483648
    %v1627 = vor.u32 1.1754944e-38, %v1626
    %v1628 = vsel %vm1625, %v1627, %v1623
    %v1629 = vmul.f32 1.0, %v1628
    %v1630 = vtanh.pop %v1609
    %v1631 = vmul.f32 %v1629, %v1574
    %1633 = vrot.lane.b32.xlu0 %v1630, 32
    %v1634 = vpop.permute.xlu0 %1633
    %v1636 = vmul.f32 %v1629, %v1634
    %1638 = vrot.lane.b32.xlu0 %v1636, 32
    %v1639 = vpop.permute.xlu0 %1638
    %v1641 = vadd.f32 %v1631, %v1639
    %v1642 = vtanh.pop %v1641
    %1644 = vrot.lane.b32.xlu0 %v1642, 32
    %v1645 = vpop.permute.xlu0 %1644
    %v1647 = vmul.f32 %v1629, %v1645
    %vm1648 = vcmask 783872
    %1649 = vst.msk [vmem:[#allocation2] sm:$0x3f] %vm1648, %v1647
    %1651 = vrot.lane.b32.xlu0 %v1647, 64
    %v1652 = vpop.permute.xlu0 %1651
    %v1653 = vsel %vm107, %v1652, 0
    %1655 = vmatpush.msra.mxu0 0.0
    %1656 = vmatpush.msra.mxu0 0.0
    %1657 = vmatpush.msra.mxu0 0.0
    %1658 = vmatpush.msra.mxu0 0.0
    %1659 = vmatpush.msra.mxu0 0.0
    %1660 = vmatpush.msra.mxu0 0.0
    %1661 = vmatpush.msra.mxu0 0.0
    %1662 = vmatpush.msra.mxu0 0.0
    %1663 = vmatpush.msra.mxu0 0.0
    %1664 = vmatpush.msra.mxu0 0.0
    %1665 = vmatpush.msra.mxu0 0.0
    %1666 = vmatpush.msra.mxu0 0.0
    %1667 = vmatpush.msra.mxu0 %v1452
    %1668 = vmatpush.msra.mxu0 %v1451
    %1669 = vmatpush.msra.mxu0 %v1450
    %1670 = vmatpush.msra.mxu0 %v1449
    %1671 = vmatmul.f32.gmra.mxu0 %v1653
    %v1672 = vpop.f32.mrf.mxu0
    %v1673 = vadd.f32 %v1521, %v1672
    %1674 = vdwg.mxu0
    %v1675 = vxor.u32 %v1673, 2147483648
    %v1676 = vmul.f32 %v1675, 1.442695
    %v1677 = vpow.pop %v1676
    %v1678 = vadd.f32 %v1677, 1.0
    %v1679 = vrcp.pop %v1678
    %v1680 = vmul.f32 %v1678, %v1679
    %v1681 = vsub.f32 1.0, %v1680
    %v1682 = vmul.f32 %v1679, %v1681
    %v1683 = vadd.f32 %v1679, %v1682
    %vm1684 = vweird.f32 %v1678
    %vm1685 = vweird.f32 %v1679
    %vm1686 = vmor %vm1684, %vm1685
    %v1687 = vsel %vm1686, %v1679, %v1683
    %v1688 = vand.u32 2147483647, %v1678
    %vm1689 = vcmp.eq.f32.partialorder %v1688, 8.507059e+37
    %v1690 = vand.u32 %v1678, 2147483648
    %v1691 = vor.u32 1.1754944e-38, %v1690
    %v1692 = vsel %vm1689, %v1691, %v1687
    %v1693 = vmul.f32 1.0, %v1692
    %v1694 = vtanh.pop %v1673
    %v1695 = vmul.f32 %v1693, %v1641
    %1697 = vrot.lane.b32.xlu0 %v1694, 32
    %v1698 = vpop.permute.xlu0 %1697
    %v1700 = vmul.f32 %v1693, %v1698
    %1702 = vrot.lane.b32.xlu0 %v1700, 32
    %v1703 = vpop.permute.xlu0 %1702
    %v1705 = vadd.f32 %v1695, %v1703
    %v1706 = vtanh.pop %v1705
    %1708 = vrot.lane.b32.xlu0 %v1706, 32
    %v1709 = vpop.permute.xlu0 %1708
    %v1711 = vmul.f32 %v1693, %v1709
    %1713 = vrot.lane.b32.xlu0 %v1711, 32
    %v1714 = vpop.permute.xlu0 %1713
    %vm1716 = vcmask 1046272
    %1717 = vst.msk [vmem:[#allocation2] sm:$0x3f] %vm1716, %v1714
    %1718 = vrot.lane.b32.xlu0 %v1711, 64
    %v1719 = vpop.permute.xlu0 %1718
    %v1720 = vsel %vm107, %v1719, 0
    %1722 = vmatpush.msra.mxu0 0.0
    %1723 = vmatpush.msra.mxu0 0.0
    %1724 = vmatpush.msra.mxu0 0.0
    %1725 = vmatpush.msra.mxu0 0.0
    %1726 = vmatpush.msra.mxu0 0.0
    %1727 = vmatpush.msra.mxu0 0.0
    %1728 = vmatpush.msra.mxu0 0.0
    %1729 = vmatpush.msra.mxu0 0.0
    %1730 = vmatpush.msra.mxu0 0.0
    %1731 = vmatpush.msra.mxu0 0.0
    %1732 = vmatpush.msra.mxu0 0.0
    %1733 = vmatpush.msra.mxu0 0.0
    %1734 = vmatpush.msra.mxu0 %v1452
    %1735 = vmatpush.msra.mxu0 %v1451
    %1736 = vmatpush.msra.mxu0 %v1450
    %1737 = vmatpush.msra.mxu0 %v1449
    %1738 = vmatmul.f32.gmra.mxu0 %v1720
    %v1739 = vpop.f32.mrf.mxu0
    %v1740 = vadd.f32 %v1521, %v1739
    %1741 = vdwg.mxu0
    %v1742 = vxor.u32 %v1740, 2147483648
    %v1743 = vmul.f32 %v1742, 1.442695
    %v1744 = vpow.pop %v1743
    %v1745 = vadd.f32 %v1744, 1.0
    %v1746 = vrcp.pop %v1745
    %v1747 = vmul.f32 %v1745, %v1746
    %v1748 = vsub.f32 1.0, %v1747
    %v1749 = vmul.f32 %v1746, %v1748
    %v1750 = vadd.f32 %v1746, %v1749
    %vm1751 = vweird.f32 %v1745
    %vm1752 = vweird.f32 %v1746
    %vm1753 = vmor %vm1751, %vm1752
    %v1754 = vsel %vm1753, %v1746, %v1750
    %v1755 = vand.u32 2147483647, %v1745
    %vm1756 = vcmp.eq.f32.partialorder %v1755, 8.507059e+37
    %v1757 = vand.u32 %v1745, 2147483648
    %v1758 = vor.u32 1.1754944e-38, %v1757
    %v1759 = vsel %vm1756, %v1758, %v1754
    %v1760 = vmul.f32 1.0, %v1759
    %v1761 = vtanh.pop %v1740
    %v1762 = vmul.f32 %v1760, %v1705
    %1764 = vrot.lane.b32.xlu0 %v1761, 32
    %v1765 = vpop.permute.xlu0 %1764
    %v1767 = vmul.f32 %v1760, %v1765
    %1769 = vrot.lane.b32.xlu0 %v1767, 32
    %v1770 = vpop.permute.xlu0 %1769
    %v1772 = vadd.f32 %v1762, %v1770
    %v1773 = vtanh.pop %v1772
    %1775 = vrot.lane.b32.xlu0 %v1773, 32
    %v1776 = vpop.permute.xlu0 %1775
    %v1778 = vmul.f32 %v1760, %v1776
    %1780 = vrot.lane.b32.xlu0 %v1778, 64
    %v1781 = vpop.permute.xlu0 %1780
    %1783 = vst.msk [vmem:[#allocation2 + $0x8] sm:$0x3f] %vm1519, %v1781
    %v1784 = vsel %vm107, %v1781, 0
    %1786 = vmatpush.msra.mxu0 0.0
    %1787 = vmatpush.msra.mxu0 0.0
    %1788 = vmatpush.msra.mxu0 0.0
    %1789 = vmatpush.msra.mxu0 0.0
    %1790 = vmatpush.msra.mxu0 0.0
    %1791 = vmatpush.msra.mxu0 0.0
    %1792 = vmatpush.msra.mxu0 0.0
    %1793 = vmatpush.msra.mxu0 0.0
    %1794 = vmatpush.msra.mxu0 0.0
    %1795 = vmatpush.msra.mxu0 0.0
    %1796 = vmatpush.msra.mxu0 0.0
    %1797 = vmatpush.msra.mxu0 0.0
    %1798 = vmatpush.msra.mxu0 %v1452
    %1799 = vmatpush.msra.mxu0 %v1451
    %1800 = vmatpush.msra.mxu0 %v1450
    %1801 = vmatpush.msra.mxu0 %v1449
    %1802 = vmatmul.f32.gmra.mxu0 %v1784
    %v1803 = vpop.f32.mrf.mxu0
    %v1804 = vadd.f32 %v1521, %v1803
    %1805 = vdwg.mxu0
    %v1806 = vxor.u32 %v1804, 2147483648
    %v1807 = vmul.f32 %v1806, 1.442695
    %v1808 = vpow.pop %v1807
    %v1809 = vadd.f32 %v1808, 1.0
    %v1810 = vrcp.pop %v1809
    %v1811 = vmul.f32 %v1809, %v1810
    %v1812 = vsub.f32 1.0, %v1811
    %v1813 = vmul.f32 %v1810, %v1812
    %v1814 = vadd.f32 %v1810, %v1813
    %vm1815 = vweird.f32 %v1809
    %vm1816 = vweird.f32 %v1810
    %vm1817 = vmor %vm1815, %vm1816
    %v1818 = vsel %vm1817, %v1810, %v1814
    %v1819 = vand.u32 2147483647, %v1809
    %vm1820 = vcmp.eq.f32.partialorder %v1819, 8.507059e+37
    %v1821 = vand.u32 %v1809, 2147483648
    %v1822 = vor.u32 1.1754944e-38, %v1821
    %v1823 = vsel %vm1820, %v1822, %v1818
    %v1824 = vmul.f32 1.0, %v1823
    %v1825 = vtanh.pop %v1804
    %v1826 = vmul.f32 %v1824, %v1772
    %1828 = vrot.lane.b32.xlu0 %v1825, 32
    %v1829 = vpop.permute.xlu0 %1828
    %v1831 = vmul.f32 %v1824, %v1829
    %1833 = vrot.lane.b32.xlu0 %v1831, 32
    %v1834 = vpop.permute.xlu0 %1833
    %v1836 = vadd.f32 %v1826, %v1834
    %v1837 = vtanh.pop %v1836
    %1839 = vrot.lane.b32.xlu0 %v1837, 32
    %v1840 = vpop.permute.xlu0 %1839
    %v1842 = vmul.f32 %v1824, %v1840
    %1844 = vrot.lane.b32.xlu0 %v1842, 96
    %v1845 = vpop.permute.xlu0 %1844
    %1847 = vst.msk [vmem:[#allocation2 + $0x8] sm:$0x3f] %vm1585, %v1845
    %1848 = vrot.lane.b32.xlu0 %v1842, 64
    %v1849 = vpop.permute.xlu0 %1848
    %v1850 = vsel %vm107, %v1849, 0
    %1852 = vmatpush.msra.mxu0 0.0
    %1853 = vmatpush.msra.mxu0 0.0
    %1854 = vmatpush.msra.mxu0 0.0
    %1855 = vmatpush.msra.mxu0 0.0
    %1856 = vmatpush.msra.mxu0 0.0
    %1857 = vmatpush.msra.mxu0 0.0
    %1858 = vmatpush.msra.mxu0 0.0
    %1859 = vmatpush.msra.mxu0 0.0
    %1860 = vmatpush.msra.mxu0 0.0
    %1861 = vmatpush.msra.mxu0 0.0
    %1862 = vmatpush.msra.mxu0 0.0
    %1863 = vmatpush.msra.mxu0 0.0
    %1864 = vmatpush.msra.mxu0 %v1452
    %1865 = vmatpush.msra.mxu0 %v1451
    %1866 = vmatpush.msra.mxu0 %v1450
    %1867 = vmatpush.msra.mxu0 %v1449
    %1868 = vmatmul.f32.gmra.mxu0 %v1850
    %v1869 = vpop.f32.mrf.mxu0
    %v1870 = vadd.f32 %v1521, %v1869
    %1871 = vdwg.mxu0
    %v1872 = vxor.u32 %v1870, 2147483648
    %v1873 = vmul.f32 %v1872, 1.442695
    %v1874 = vpow.pop %v1873
    %v1875 = vadd.f32 %v1874, 1.0
    %v1876 = vrcp.pop %v1875
    %v1877 = vmul.f32 %v1875, %v1876
    %v1878 = vsub.f32 1.0, %v1877
    %v1879 = vmul.f32 %v1876, %v1878
    %v1880 = vadd.f32 %v1876, %v1879
    %vm1881 = vweird.f32 %v1875
    %vm1882 = vweird.f32 %v1876
    %vm1883 = vmor %vm1881, %vm1882
    %v1884 = vsel %vm1883, %v1876, %v1880
    %v1885 = vand.u32 2147483647, %v1875
    %vm1886 = vcmp.eq.f32.partialorder %v1885, 8.507059e+37
    %v1887 = vand.u32 %v1875, 2147483648
    %v1888 = vor.u32 1.1754944e-38, %v1887
    %v1889 = vsel %vm1886, %v1888, %v1884
    %v1890 = vmul.f32 1.0, %v1889
    %v1891 = vtanh.pop %v1870
    %v1892 = vmul.f32 %v1890, %v1836
    %1894 = vrot.lane.b32.xlu0 %v1891, 32
    %v1895 = vpop.permute.xlu0 %1894
    %v1897 = vmul.f32 %v1890, %v1895
    %1899 = vrot.lane.b32.xlu0 %v1897, 32
    %v1900 = vpop.permute.xlu0 %1899
    %v1902 = vadd.f32 %v1892, %v1900
    %v1903 = vtanh.pop %v1902
    %1905 = vrot.lane.b32.xlu0 %v1903, 32
    %v1906 = vpop.permute.xlu0 %1905
    %v1908 = vmul.f32 %v1890, %v1906
    %1909 = vst.msk [vmem:[#allocation2 + $0x8] sm:$0x3f] %vm1648, %v1908
    %1911 = vrot.lane.b32.xlu0 %v1908, 64
    %v1912 = vpop.permute.xlu0 %1911
    %v1913 = vsel %vm107, %v1912, 0
    %1915 = vmatpush.msra.mxu0 0.0
    %1916 = vmatpush.msra.mxu0 0.0
    %1917 = vmatpush.msra.mxu0 0.0
    %1918 = vmatpush.msra.mxu0 0.0
    %1919 = vmatpush.msra.mxu0 0.0
    %1920 = vmatpush.msra.mxu0 0.0
    %1921 = vmatpush.msra.mxu0 0.0
    %1922 = vmatpush.msra.mxu0 0.0
    %1923 = vmatpush.msra.mxu0 0.0
    %1924 = vmatpush.msra.mxu0 0.0
    %1925 = vmatpush.msra.mxu0 0.0
    %1926 = vmatpush.msra.mxu0 0.0
    %1927 = vmatpush.msra.mxu0 %v1452
    %1928 = vmatpush.msra.mxu0 %v1451
    %1929 = vmatpush.msra.mxu0 %v1450
    %1930 = vmatpush.msra.mxu0 %v1449
    %1931 = vmatmul.f32.gmra.mxu0 %v1913
    %v1932 = vpop.f32.mrf.mxu0
    %v1933 = vadd.f32 %v1521, %v1932
    %1934 = vdwg.mxu0
    %v1935 = vxor.u32 %v1933, 2147483648
    %v1936 = vmul.f32 %v1935, 1.442695
    %v1937 = vpow.pop %v1936
    %v1938 = vadd.f32 %v1937, 1.0
    %v1939 = vrcp.pop %v1938
    %v1940 = vmul.f32 %v1938, %v1939
    %v1941 = vsub.f32 1.0, %v1940
    %v1942 = vmul.f32 %v1939, %v1941
    %v1943 = vadd.f32 %v1939, %v1942
    %vm1944 = vweird.f32 %v1938
    %vm1945 = vweird.f32 %v1939
    %vm1946 = vmor %vm1944, %vm1945
    %v1947 = vsel %vm1946, %v1939, %v1943
    %v1948 = vand.u32 2147483647, %v1938
    %vm1949 = vcmp.eq.f32.partialorder %v1948, 8.507059e+37
    %v1950 = vand.u32 %v1938, 2147483648
    %v1951 = vor.u32 1.1754944e-38, %v1950
    %v1952 = vsel %vm1949, %v1951, %v1947
    %v1953 = vmul.f32 1.0, %v1952
    %v1954 = vtanh.pop %v1933
    %v1955 = vmul.f32 %v1953, %v1902
    %1957 = vrot.lane.b32.xlu0 %v1954, 32
    %v1958 = vpop.permute.xlu0 %1957
    %v1960 = vmul.f32 %v1953, %v1958
    %1962 = vrot.lane.b32.xlu0 %v1960, 32
    %v1963 = vpop.permute.xlu0 %1962
    %v1965 = vadd.f32 %v1955, %v1963
    %v1966 = vtanh.pop %v1965
    %1968 = vrot.lane.b32.xlu0 %v1966, 32
    %v1969 = vpop.permute.xlu0 %1968
    %v1971 = vmul.f32 %v1953, %v1969
    %1973 = vrot.lane.b32.xlu0 %v1971, 32
    %v1974 = vpop.permute.xlu0 %1973
    %1976 = vst.msk [vmem:[#allocation2 + $0x8] sm:$0x3f] %vm1716, %v1974
    %v1977 = vld [vmem:[#allocation2] sm:$0x3f]
    %v1978 = vld [vmem:[#allocation2 + $0x8] sm:$0x3f]
    %v1979 = vld [vmem:[#allocation3 + $0x130] sm:$0xff]
    %v1980 = vld [vmem:[#allocation3 + $0x138] sm:$0xff]
    %v1981 = vld [vmem:[#allocation3 + $0x140] sm:$0xff]
    %v1982 = vld [vmem:[#allocation3 + $0x148] sm:$0xff]
    %v1983 = vld [vmem:[#allocation3 + $0x150] sm:$0xff]
    %v1984 = vld [vmem:[#allocation3 + $0x158] sm:$0xff]
    %v1985 = vld [vmem:[#allocation3 + $0x160] sm:$0xff]
    %v1986 = vld [vmem:[#allocation3 + $0x168] sm:$0xff]
    %v1987 = vld [vmem:[#allocation3 + $0x170] sm:$0xff]
    %v1988 = vld [vmem:[#allocation3 + $0x178] sm:$0xff]
    %v1989 = vld [vmem:[#allocation3 + $0x180] sm:$0xff]
    %v1990 = vld [vmem:[#allocation3 + $0x188] sm:$0xff]
    %v1991 = vld [vmem:[#allocation3 + $0x190] sm:$0xff]
    %v1992 = vld [vmem:[#allocation3 + $0x198] sm:$0xff]
    %v1993 = vld [vmem:[#allocation3 + $0x1a0] sm:$0xff]
    %v1994 = vld [vmem:[#allocation3 + $0x1a8] sm:$0xff]
    %v1995 = vld [vmem:[#allocation3 + $0x1b0] sm:$0xff]
    %v1996 = vld [vmem:[#allocation3 + $0x1b8] sm:$0xff]
    %v1997 = vld [vmem:[#allocation3 + $0x1c0] sm:$0xff]
    %v1998 = vld [vmem:[#allocation3 + $0x1c8] sm:$0xff]
    %v1999 = vld [vmem:[#allocation3 + $0x1d0] sm:$0xff]
    %v2000 = vld [vmem:[#allocation3 + $0x1d8] sm:$0xff]
    %v2001 = vld [vmem:[#allocation3 + $0x1e0] sm:$0xff]
    %v2002 = vld [vmem:[#allocation3 + $0x1e8] sm:$0xff]
    %v2003 = vld [vmem:[#allocation3 + $0x1f0] sm:$0xff]
    %v2004 = vld [vmem:[#allocation3 + $0x1f8] sm:$0xff]
    %v2005 = vld [vmem:[#allocation3 + $0x200] sm:$0xff]
    %v2006 = vld [vmem:[#allocation3 + $0x208] sm:$0xff]
    %v2007 = vld [vmem:[#allocation3 + $0x210] sm:$0xff]
    %v2008 = vld [vmem:[#allocation3 + $0x218] sm:$0xff]
    %v2009 = vld [vmem:[#allocation3 + $0x220] sm:$0xff]
    %v2010 = vld [vmem:[#allocation3 + $0x228] sm:$0xff]
    %v2011 = vld [vmem:[%s4 + $0x9] sm:$0x1]
    %v2012 = vperm.slane %v2011, 0
    %2013 = vmatpush.msra.mxu0 %v1994
    %2014 = vmatpush.msra.mxu0 %v1993
    %2015 = vmatpush.msra.mxu0 %v1992
    %2016 = vmatpush.msra.mxu0 %v1991
    %2017 = vmatpush.msra.mxu0 %v1990
    %2018 = vmatpush.msra.mxu0 %v1989
    %2019 = vmatpush.msra.mxu0 %v1988
    %2020 = vmatpush.msra.mxu0 %v1987
    %2021 = vmatpush.msra.mxu0 %v1986
    %2022 = vmatpush.msra.mxu0 %v1985
    %2023 = vmatpush.msra.mxu0 %v1984
    %2024 = vmatpush.msra.mxu0 %v1983
    %2025 = vmatpush.msra.mxu0 %v1982
    %2026 = vmatpush.msra.mxu0 %v1981
    %2027 = vmatpush.msra.mxu0 %v1980
    %2028 = vmatpush.msra.mxu0 %v1979
    %2029 = vmatmul.f32.gmra.mxu0 %v1977
    %v2030 = vpop.f32.mrf.mxu0
    %v2031 = vadd.f32 %v2012, %v2030
    %2032 = vdwg.mxu0
    %2033 = vmatpush.msra.mxu0 %v2010
    %2034 = vmatpush.msra.mxu0 %v2009
    %2035 = vmatpush.msra.mxu0 %v2008
    %2036 = vmatpush.msra.mxu0 %v2007
    %2037 = vmatpush.msra.mxu0 %v2006
    %2038 = vmatpush.msra.mxu0 %v2005
    %2039 = vmatpush.msra.mxu0 %v2004
    %2040 = vmatpush.msra.mxu0 %v2003
    %2041 = vmatpush.msra.mxu0 %v2002
    %2042 = vmatpush.msra.mxu0 %v2001
    %2043 = vmatpush.msra.mxu0 %v2000
    %2044 = vmatpush.msra.mxu0 %v1999
    %2045 = vmatpush.msra.mxu0 %v1998
    %2046 = vmatpush.msra.mxu0 %v1997
    %2047 = vmatpush.msra.mxu0 %v1996
    %2048 = vmatpush.msra.mxu0 %v1995
    %2049 = vmatmul.f32.gmra.mxu0 %v1978
    %v2050 = vpop.f32.mrf.mxu0
    %v2051 = vadd.f32 %v2031, %v2050
    %2052 = vdwg.mxu0
    %vm2053 = vcmask 128000
    %2054 = vst.msk [vmem:[%s5] sm:$0x3f] %vm2053, %v2051
    // Predicated region
    $region26: #{_lambda_.1} parent=1 // pred_check
      _
    $region27: #{_lambda_.1} parent=1 // pred_check_branch
      %2056 = sbr.rel (0) target = $region29
    $region28: #{_lambda_.1} parent=1 // pred_region
      _
    $region29: #{_lambda_.1} parent=1 // pred_fallthru
      _
    // Predicated region
    $region30: #{_lambda_.1} parent=1 // pred_check
      _
    $region31: #{_lambda_.1} parent=1 // pred_check_branch
      %2058 = sbr.rel (0) target = $region33
    $region32: #{_lambda_.1} parent=1 // pred_region
      _
    $region33: #{_lambda_.1} parent=1 // pred_fallthru
      _
    %2059 = vsyncpa [#allocation4], 1

</llo_original>
